<compile_context>
chip_gen: v6e
topology: v6e:2x2x1
jax: 0.10.0
libtpu: 0.0.40
codegen_flags: <defaults>
</compile_context>

<pallas_src>
import math
import functools

import jax
import jax.numpy as jnp
from jax.experimental import pallas as pl
from jax.experimental.pallas import tpu as pltpu


def _mha_flash_kernel(*refs, num_heads: int, has_mask: bool):
    if has_mask:
        (q_ref, k_ref, v_ref, mask_ref,
         wq_ref, bq_ref, wk_ref, bk_ref, wv_ref, bv_ref, wo_ref, bo_ref,
         out_ref,
         qh_sc, m_sc, l_sc, acc_sc) = refs
    else:
        (q_ref, k_ref, v_ref,
         wq_ref, bq_ref, wk_ref, bk_ref, wv_ref, bv_ref, wo_ref, bo_ref,
         out_ref,
         qh_sc, m_sc, l_sc, acc_sc) = refs
        mask_ref = None

    compute_dtype = q_ref.dtype
    d_model = q_ref.shape[-1]
    d_k = d_model // num_heads
    scale = 1.0 / math.sqrt(d_k)

    ik = pl.program_id(2)

    # ---- first Sk step for this (batch, Sq-tile): init stats, project Q ----
    @pl.when(ik == 0)
    def _init():
        m_sc[...] = jnp.full(m_sc.shape, -jnp.inf, dtype=m_sc.dtype)
        l_sc[...] = jnp.zeros(l_sc.shape, dtype=l_sc.dtype)
        acc_sc[...] = jnp.zeros(acc_sc.shape, dtype=acc_sc.dtype)

        q_tile = q_ref[0]                                        # (tq, D) native dtype
        qp = jnp.dot(q_tile, wq_ref[...],
                     preferred_element_type=jnp.float32) + bq_ref[...]
        qp = qp * scale                                          # fold 1/sqrt(d_k) into Q
        for h in range(num_heads):
            qh_sc[h] = qp[:, h * d_k:(h + 1) * d_k].astype(compute_dtype)

    # ---- project the current K/V tile (changes every Sk step, kept as values) ----
    k_tile = k_ref[0]                                            # (tk, D)
    v_tile = v_ref[0]
    kp = jnp.dot(k_tile, wk_ref[...],
                 preferred_element_type=jnp.float32) + bk_ref[...]
    vp = jnp.dot(v_tile, wv_ref[...],
                 preferred_element_type=jnp.float32) + bv_ref[...]
    kh = jnp.stack([kp[:, h * d_k:(h + 1) * d_k] for h in range(num_heads)],
                   axis=0).astype(compute_dtype)                 # (H, tk, d_k)
    vh = jnp.stack([vp[:, h * d_k:(h + 1) * d_k] for h in range(num_heads)],
                   axis=0).astype(compute_dtype)                 # (H, tk, d_k)

    # ---- head-batched scores + online-softmax update ----
    s = jnp.einsum('hqd,hkd->hqk', qh_sc[...], kh,
                   preferred_element_type=jnp.float32)           # (H, tq, tk) f32
    if has_mask:
        mask_tile = mask_ref[0]                                  # (tq, tk) int8
        s = jnp.where(mask_tile[None, :, :] == 0, jnp.float32(-1e9), s)

    m_prev = m_sc[...]                                           # (H, tq, 1) f32
    m_next = jnp.maximum(m_prev, jnp.max(s, axis=-1, keepdims=True))
    alpha = jnp.exp(m_prev - m_next)
    p = jnp.exp(s - m_next)                                      # (H, tq, tk) f32
    l_sc[...] = alpha * l_sc[...] + jnp.sum(p, axis=-1, keepdims=True)
    acc_sc[...] = alpha * acc_sc[...] + jnp.einsum(
        'hqk,hkd->hqd', p.astype(compute_dtype), vh,
        preferred_element_type=jnp.float32)
    m_sc[...] = m_next

    # ---- last Sk step: normalize once, combine heads lane-dense, apply W_o ----
    @pl.when(ik == pl.num_programs(2) - 1)
    def _finalize():
        inv_l = pl.reciprocal(l_sc[...], approx=True)            # EUP, ~free
        heads = [(acc_sc[h] * inv_l[h]).astype(compute_dtype)
                 for h in range(num_heads)]
        combined = jnp.concatenate(heads, axis=-1)               # (tq, D) lane-dense
        out = jnp.dot(combined, wo_ref[...],
                      preferred_element_type=jnp.float32) + bo_ref[...]
        out_ref[0] = out.astype(out_ref.dtype)


def _pick_tile(s, max_tile=512):
    """Largest power-of-two multiple of 128 that divides s; full s if irregular."""
    if s % 128 == 0:
        t = max_tile
        while t >= 128:
            if s % t == 0:
                return t
            t //= 2
        return 128
    return s


def multi_head_attention(Q, K, V, params, *, num_heads, mask=None,
                         q_tile=None, k_tile=None):
    """Q, K, V: (B, S, D).  mask: optional (B, S_q, S_k); None == no masking."""
    B, Sq, D = Q.shape
    Sk = K.shape[1]
    assert D % num_heads == 0, "d_model must be divisible by num_heads"
    d_k = D // num_heads

    wq, bq, wk, bk, wv, bv, wo, bo = params

    tq = q_tile or _pick_tile(Sq)
    tk = k_tile or _pick_tile(Sk)
    n_q = Sq // tq
    n_k = Sk // tk
    assert n_q * tq == Sq and n_k * tk == Sk

    has_mask = mask is not None
    compute_dtype = Q.dtype

    q_spec = pl.BlockSpec((1, tq, D), lambda b, iq, ik: (b, iq, 0))
    kv_spec = pl.BlockSpec((1, tk, D), lambda b, iq, ik: (b, ik, 0))
    w_spec = pl.BlockSpec((D, D), lambda b, iq, ik: (0, 0))
    bias_spec = pl.BlockSpec((1, D), lambda b, iq, ik: (0, 0))
    out_spec = pl.BlockSpec((1, tq, D), lambda b, iq, ik: (b, iq, 0))

    in_specs = [q_spec, kv_spec, kv_spec]
    inputs = [Q, K, V]
    if has_mask:
        in_specs.append(pl.BlockSpec((1, tq, tk), lambda b, iq, ik: (b, iq, ik)))
        inputs.append(mask.astype(jnp.int8))
    in_specs += [w_spec, bias_spec, w_spec, bias_spec,
                 w_spec, bias_spec, w_spec, bias_spec]
    inputs += [wq, bq, wk, bk, wv, bv, wo, bo]

    scratch_shapes = [
        pltpu.VMEM((num_heads, tq, d_k), compute_dtype),   # projected Q (head-major)
        pltpu.VMEM((num_heads, tq, 1), jnp.float32),       # running max  m
        pltpu.VMEM((num_heads, tq, 1), jnp.float32),       # running sum  l
        pltpu.VMEM((num_heads, tq, d_k), jnp.float32),     # running output acc
    ]

    # VMEM budget derived from the chosen tiles (double-buffered blocks + scratch).
    # TODO(synk): for very large D (>= 2048) the (D, D) weights should themselves
    # be tiled over an extra grid axis to respect v7x's 64 MiB VMEM.
    xb = jnp.dtype(compute_dtype).itemsize
    block_bytes = (tq * D + 2 * tk * D + tq * D) * xb + 4 * D * D * xb + 4 * D * xb
    if has_mask:
        block_bytes += tq * tk                              # int8 mask tile
    scratch_bytes = (num_heads * tq * d_k) * xb \
        + (num_heads * tq * (2 + d_k)) * 4
    vmem_limit = int(1.5 * (2 * block_bytes + scratch_bytes))
    vmem_limit = max(vmem_limit, 16 * 1024 * 1024)
    vmem_limit = min(vmem_limit, 48 * 1024 * 1024)

    kernel = functools.partial(_mha_flash_kernel,
                               num_heads=num_heads, has_mask=has_mask)

    return pl.pallas_call(
        kernel,
        out_shape=jax.ShapeDtypeStruct((B, Sq, D), Q.dtype),
        grid_spec=pltpu.PrefetchScalarGridSpec(
            num_scalar_prefetch=0,
            grid=(B, n_q, n_k),
            in_specs=in_specs,
            out_specs=out_spec,
            scratch_shapes=scratch_shapes,
        ),
        compiler_params=pltpu.CompilerParams(
            dimension_semantics=("parallel", "parallel", "arbitrary"),
            vmem_limit_bytes=vmem_limit,
        ),
    )(*inputs)


def reference_mha(Q, K, V, params, *, num_heads, mask=None):
    """Pure-JAX reference mirroring the PyTorch module."""
    wq, bq, wk, bk, wv, bv, wo, bo = params
    B, Sq, D = Q.shape
    d_k = D // num_heads

    def split(x):  # (B, S, D) -> (B, H, S, d_k)
        B_, S_, _ = x.shape
        return x.reshape(B_, S_, num_heads, d_k).transpose(0, 2, 1, 3)

    Qp = split(Q @ wq + bq)
    Kp = split(K @ wk + bk)
    Vp = split(V @ wv + bv)
    scores = jnp.einsum("bhqd,bhkd->bhqk", Qp, Kp) / math.sqrt(d_k)
    if mask is not None:
        scores = jnp.where(mask[:, None, :, :] == 0, -1e9, scores)
    probs = jax.nn.softmax(scores, axis=-1)
    attn = jnp.einsum("bhqk,bhkd->bhqd", probs, Vp)
    attn = attn.transpose(0, 2, 1, 3).reshape(B, Sq, D)
    return attn @ wo + bo


if __name__ == "__main__":
    # Small deterministic example: batch=2, seq=8, d_model=32, heads=4.
    B, S, D, H = 2, 8, 32, 4

    key = jax.random.PRNGKey(0)
    keys = jax.random.split(key, 14)

    bound = 1.0 / math.sqrt(D)
    wq = jax.random.uniform(keys[0], (D, D), jnp.float32, -bound, bound)
    bq = jax.random.uniform(keys[1], (1, D), jnp.float32, -bound, bound)
    wk = jax.random.uniform(keys[2], (D, D), jnp.float32, -bound, bound)
    bk = jax.random.uniform(keys[3], (1, D), jnp.float32, -bound, bound)
    wv = jax.random.uniform(keys[4], (D, D), jnp.float32, -bound, bound)
    bv = jax.random.uniform(keys[5], (1, D), jnp.float32, -bound, bound)
    wo = jax.random.uniform(keys[6], (D, D), jnp.float32, -bound, bound)
    bo = jax.random.uniform(keys[7], (1, D), jnp.float32, -bound, bound)
    params = (wq, bq, wk, bk, wv, bv, wo, bo)

    Q = jax.random.normal(keys[8], (B, S, D), jnp.float32)
    K = jax.random.normal(keys[9], (B, S, D), jnp.float32)
    V = jax.random.normal(keys[10], (B, S, D), jnp.float32)

    # mask=None path: no dense mask is materialized or DMA'd.
    out = multi_head_attention(Q, K, V, params, num_heads=H, mask=None)
    out = jax.block_until_ready(out)
    ref = reference_mha(Q, K, V, params, num_heads=H, mask=None)
    assert out.shape == (B, S, D)
    # tolerance covers the approximate (EUP) reciprocal used for softmax norm
    assert jnp.allclose(out, ref, atol=1e-2, rtol=1e-2), "mismatch (no mask)"

    # explicit (causal) mask path: int8 mask streamed in (tq, tk) tiles.
    causal = jnp.tril(jnp.ones((S, S), jnp.int8))
    mask = jnp.broadcast_to(causal, (B, S, S))
    out_m = multi_head_attention(Q, K, V, params, num_heads=H, mask=mask)
    out_m = jax.block_until_ready(out_m)
    ref_m = reference_mha(Q, K, V, params, num_heads=H, mask=mask)
    assert jnp.allclose(out_m, ref_m, atol=1e-2, rtol=1e-2), "mismatch (mask)"

    # cross-attention path (S_q != S_k), exercises distinct Q vs K/V sequence tiling.
    Sk2 = 16
    Kx = jax.random.normal(keys[11], (B, Sk2, D), jnp.float32)
    Vx = jax.random.normal(keys[12], (B, Sk2, D), jnp.float32)
    out_x = multi_head_attention(Q, Kx, Vx, params, num_heads=H, mask=None)
    out_x = jax.block_until_ready(out_x)
    ref_x = reference_mha(Q, Kx, Vx, params, num_heads=H, mask=None)
    assert jnp.allclose(out_x, ref_x, atol=1e-2, rtol=1e-2), "mismatch (cross)"

    print("KERNEL_OK")
</pallas_src>

<mosaic_0001>
module attributes {stable_mosaic.version = 11 : i64} {
  func.func @_mha_flash_kernel(%arg0: i32, %arg1: i32, %arg2: i32, %arg3: memref<1x8x32xf32, #tpu.memory_space<vmem>>, %arg4: memref<1x8x32xf32, #tpu.memory_space<vmem>>, %arg5: memref<1x8x32xf32, #tpu.memory_space<vmem>>, %arg6: memref<32x32xf32, #tpu.memory_space<vmem>>, %arg7: memref<1x32xf32, #tpu.memory_space<vmem>>, %arg8: memref<32x32xf32, #tpu.memory_space<vmem>>, %arg9: memref<1x32xf32, #tpu.memory_space<vmem>>, %arg10: memref<32x32xf32, #tpu.memory_space<vmem>>, %arg11: memref<1x32xf32, #tpu.memory_space<vmem>>, %arg12: memref<32x32xf32, #tpu.memory_space<vmem>>, %arg13: memref<1x32xf32, #tpu.memory_space<vmem>>, %arg14: memref<1x8x32xf32, #tpu.memory_space<vmem>>, %arg15: memref<4x8x8xf32, #tpu.memory_space<vmem>>, %arg16: memref<4x8x1xf32, #tpu.memory_space<vmem>>, %arg17: memref<4x8x1xf32, #tpu.memory_space<vmem>>, %arg18: memref<4x8x8xf32, #tpu.memory_space<vmem>>) attributes {dimension_semantics = [#tpu.dimension_semantics<parallel>, #tpu.dimension_semantics<parallel>, #tpu.dimension_semantics<arbitrary>], iteration_bounds = array<i64: 2, 1, 1>, scalar_prefetch = 0 : i64, scratch_operands = 4 : i64, tpu.core_type = #tpu.core_type<tc>, window_params = [{transform_indices = @transform_0, window_bounds = array<i64: 1, 8, 32>}, {transform_indices = @transform_1, window_bounds = array<i64: 1, 8, 32>}, {transform_indices = @transform_2, window_bounds = array<i64: 1, 8, 32>}, {pipeline_mode = #tpu.pipeline_mode<synchronous>, transform_indices = @transform_3, window_bounds = array<i64: 32, 32>}, {pipeline_mode = #tpu.pipeline_mode<synchronous>, transform_indices = @transform_4, window_bounds = array<i64: 1, 32>}, {pipeline_mode = #tpu.pipeline_mode<synchronous>, transform_indices = @transform_5, window_bounds = array<i64: 32, 32>}, {pipeline_mode = #tpu.pipeline_mode<synchronous>, transform_indices = @transform_6, window_bounds = array<i64: 1, 32>}, {pipeline_mode = #tpu.pipeline_mode<synchronous>, transform_indices = @transform_7, window_bounds = array<i64: 32, 32>}, {pipeline_mode = #tpu.pipeline_mode<synchronous>, transform_indices = @transform_8, window_bounds = array<i64: 1, 32>}, {pipeline_mode = #tpu.pipeline_mode<synchronous>, transform_indices = @transform_9, window_bounds = array<i64: 32, 32>}, {pipeline_mode = #tpu.pipeline_mode<synchronous>, transform_indices = @transform_10, window_bounds = array<i64: 1, 32>}, {transform_indices = @transform_11, window_bounds = array<i64: 1, 8, 32>}]} {
    %c0_i32 = arith.constant 0 : i32
    %0 = arith.cmpi eq, %arg2, %c0_i32 : i32
    %1 = arith.extui %0 : i1 to i32
    %c0_i32_0 = arith.constant 0 : i32
    %2 = arith.cmpi ne, %1, %c0_i32_0 : i32
    scf.if %2 {
      %cst_42 = arith.constant 0xFF800000 : f32
      %62 = vector.broadcast %cst_42 : f32 to vector<4x8x1xf32>
      %c0_43 = arith.constant 0 : index
      %c0_44 = arith.constant 0 : index
      %c0_45 = arith.constant 0 : index
      %63 = vector.load %arg16[%c0_43, %c0_44, %c0_45] : memref<4x8x1xf32, #tpu.memory_space<vmem>>, vector<4x8x1xf32>
      tpu.vector_store %arg16[%c0_43, %c0_44, %c0_45], %62 {strides = array<i32>} : memref<4x8x1xf32, #tpu.memory_space<vmem>>, vector<4x8x1xf32>,
      %cst_46 = arith.constant 0.000000e+00 : f32
      %64 = vector.broadcast %cst_46 : f32 to vector<4x8x1xf32>
      %c0_47 = arith.constant 0 : index
      %c0_48 = arith.constant 0 : index
      %c0_49 = arith.constant 0 : index
      %65 = vector.load %arg17[%c0_47, %c0_48, %c0_49] : memref<4x8x1xf32, #tpu.memory_space<vmem>>, vector<4x8x1xf32>
      tpu.vector_store %arg17[%c0_47, %c0_48, %c0_49], %64 {strides = array<i32>} : memref<4x8x1xf32, #tpu.memory_space<vmem>>, vector<4x8x1xf32>,
      %cst_50 = arith.constant 0.000000e+00 : f32
      %66 = vector.broadcast %cst_50 : f32 to vector<4x8x8xf32>
      %c0_51 = arith.constant 0 : index
      %c0_52 = arith.constant 0 : index
      %c0_53 = arith.constant 0 : index
      %67 = vector.load %arg18[%c0_51, %c0_52, %c0_53] : memref<4x8x8xf32, #tpu.memory_space<vmem>>, vector<4x8x8xf32>
      tpu.vector_store %arg18[%c0_51, %c0_52, %c0_53], %66 {strides = array<i32>} : memref<4x8x8xf32, #tpu.memory_space<vmem>>, vector<4x8x8xf32>,
      %c0_54 = arith.constant 0 : index
      %c0_55 = arith.constant 0 : index
      %c0_56 = arith.constant 0 : index
      %68 = vector.load %arg3[%c0_54, %c0_55, %c0_56] : memref<1x8x32xf32, #tpu.memory_space<vmem>>, vector<1x8x32xf32>
      %69 = vector.shape_cast %68 : vector<1x8x32xf32> to vector<8x32xf32>
      %c0_57 = arith.constant 0 : index
      %c0_58 = arith.constant 0 : index
      %70 = vector.load %arg6[%c0_57, %c0_58] : memref<32x32xf32, #tpu.memory_space<vmem>>, vector<32x32xf32>
      %cst_59 = arith.constant dense<0.000000e+00> : vector<8x32xf32>
      %71 = tpu.matmul %69, %70, %cst_59 {dimension_numbers = #tpu.dot_dimension_numbers<[1], [0], [0], [1], [0, 0, 1, 1], [], []>} : vector<8x32xf32>, vector<32x32xf32>, vector<8x32xf32> -> vector<8x32xf32>
      %c0_60 = arith.constant 0 : index
      %c0_61 = arith.constant 0 : index
      %72 = vector.load %arg7[%c0_60, %c0_61] : memref<1x32xf32, #tpu.memory_space<vmem>>, vector<1x32xf32>
      %73 = vector.broadcast %72 : vector<1x32xf32> to vector<8x32xf32>
      %74 = arith.addf %71, %73 : vector<8x32xf32>
      %cst_62 = arith.constant 0.353553385 : f32
      %75 = vector.broadcast %cst_62 : f32 to vector<8x32xf32>
      %76 = arith.mulf %74, %75 : vector<8x32xf32>
      %77 = vector.extract_strided_slice %76 {offsets = [0, 0], sizes = [8, 8], strides = [1, 1]} : vector<8x32xf32> to vector<8x8xf32>
      %c0_63 = arith.constant 0 : index
      %c0_64 = arith.constant 0 : index
      %c0_65 = arith.constant 0 : index
      %78 = vector.load %arg15[%c0_63, %c0_64, %c0_65] : memref<4x8x8xf32, #tpu.memory_space<vmem>>, vector<1x8x8xf32>
      %79 = vector.shape_cast %78 : vector<1x8x8xf32> to vector<8x8xf32>
      %80 = vector.shape_cast %77 : vector<8x8xf32> to vector<1x8x8xf32>
      tpu.vector_store %arg15[%c0_63, %c0_64, %c0_65], %80 {strides = array<i32>} : memref<4x8x8xf32, #tpu.memory_space<vmem>>, vector<1x8x8xf32>,
      %81 = vector.extract_strided_slice %76 {offsets = [0, 8], sizes = [8, 8], strides = [1, 1]} : vector<8x32xf32> to vector<8x8xf32>
      %c1 = arith.constant 1 : index
      %c0_66 = arith.constant 0 : index
      %c0_67 = arith.constant 0 : index
      %82 = vector.load %arg15[%c1, %c0_66, %c0_67] : memref<4x8x8xf32, #tpu.memory_space<vmem>>, vector<1x8x8xf32>
      %83 = vector.shape_cast %82 : vector<1x8x8xf32> to vector<8x8xf32>
      %84 = vector.shape_cast %81 : vector<8x8xf32> to vector<1x8x8xf32>
      tpu.vector_store %arg15[%c1, %c0_66, %c0_67], %84 {strides = array<i32>} : memref<4x8x8xf32, #tpu.memory_space<vmem>>, vector<1x8x8xf32>,
      %85 = vector.extract_strided_slice %76 {offsets = [0, 16], sizes = [8, 8], strides = [1, 1]} : vector<8x32xf32> to vector<8x8xf32>
      %c2 = arith.constant 2 : index
      %c0_68 = arith.constant 0 : index
      %c0_69 = arith.constant 0 : index
      %86 = vector.load %arg15[%c2, %c0_68, %c0_69] : memref<4x8x8xf32, #tpu.memory_space<vmem>>, vector<1x8x8xf32>
      %87 = vector.shape_cast %86 : vector<1x8x8xf32> to vector<8x8xf32>
      %88 = vector.shape_cast %85 : vector<8x8xf32> to vector<1x8x8xf32>
      tpu.vector_store %arg15[%c2, %c0_68, %c0_69], %88 {strides = array<i32>} : memref<4x8x8xf32, #tpu.memory_space<vmem>>, vector<1x8x8xf32>,
      %89 = vector.extract_strided_slice %76 {offsets = [0, 24], sizes = [8, 8], strides = [1, 1]} : vector<8x32xf32> to vector<8x8xf32>
      %c3 = arith.constant 3 : index
      %c0_70 = arith.constant 0 : index
      %c0_71 = arith.constant 0 : index
      %90 = vector.load %arg15[%c3, %c0_70, %c0_71] : memref<4x8x8xf32, #tpu.memory_space<vmem>>, vector<1x8x8xf32>
      %91 = vector.shape_cast %90 : vector<1x8x8xf32> to vector<8x8xf32>
      %92 = vector.shape_cast %89 : vector<8x8xf32> to vector<1x8x8xf32>
      tpu.vector_store %arg15[%c3, %c0_70, %c0_71], %92 {strides = array<i32>} : memref<4x8x8xf32, #tpu.memory_space<vmem>>, vector<1x8x8xf32>,
    } else {
    }
    %c0 = arith.constant 0 : index
    %c0_1 = arith.constant 0 : index
    %c0_2 = arith.constant 0 : index
    %3 = vector.load %arg4[%c0, %c0_1, %c0_2] : memref<1x8x32xf32, #tpu.memory_space<vmem>>, vector<1x8x32xf32>
    %4 = vector.shape_cast %3 : vector<1x8x32xf32> to vector<8x32xf32>
    %c0_3 = arith.constant 0 : index
    %c0_4 = arith.constant 0 : index
    %c0_5 = arith.constant 0 : index
    %5 = vector.load %arg5[%c0_3, %c0_4, %c0_5] : memref<1x8x32xf32, #tpu.memory_space<vmem>>, vector<1x8x32xf32>
    %6 = vector.shape_cast %5 : vector<1x8x32xf32> to vector<8x32xf32>
    %c0_6 = arith.constant 0 : index
    %c0_7 = arith.constant 0 : index
    %7 = vector.load %arg8[%c0_6, %c0_7] : memref<32x32xf32, #tpu.memory_space<vmem>>, vector<32x32xf32>
    %cst = arith.constant dense<0.000000e+00> : vector<8x32xf32>
    %8 = tpu.matmul %4, %7, %cst {dimension_numbers = #tpu.dot_dimension_numbers<[1], [0], [0], [1], [0, 0, 1, 1], [], []>} : vector<8x32xf32>, vector<32x32xf32>, vector<8x32xf32> -> vector<8x32xf32>
    %c0_8 = arith.constant 0 : index
    %c0_9 = arith.constant 0 : index
    %9 = vector.load %arg9[%c0_8, %c0_9] : memref<1x32xf32, #tpu.memory_space<vmem>>, vector<1x32xf32>
    %10 = vector.broadcast %9 : vector<1x32xf32> to vector<8x32xf32>
    %11 = arith.addf %8, %10 : vector<8x32xf32>
    %c0_10 = arith.constant 0 : index
    %c0_11 = arith.constant 0 : index
    %12 = vector.load %arg10[%c0_10, %c0_11] : memref<32x32xf32, #tpu.memory_space<vmem>>, vector<32x32xf32>
    %cst_12 = arith.constant dense<0.000000e+00> : vector<8x32xf32>
    %13 = tpu.matmul %6, %12, %cst_12 {dimension_numbers = #tpu.dot_dimension_numbers<[1], [0], [0], [1], [0, 0, 1, 1], [], []>} : vector<8x32xf32>, vector<32x32xf32>, vector<8x32xf32> -> vector<8x32xf32>
    %c0_13 = arith.constant 0 : index
    %c0_14 = arith.constant 0 : index
    %14 = vector.load %arg11[%c0_13, %c0_14] : memref<1x32xf32, #tpu.memory_space<vmem>>, vector<1x32xf32>
    %15 = vector.broadcast %14 : vector<1x32xf32> to vector<8x32xf32>
    %16 = arith.addf %13, %15 : vector<8x32xf32>
    %17 = vector.extract_strided_slice %11 {offsets = [0, 0], sizes = [8, 8], strides = [1, 1]} : vector<8x32xf32> to vector<8x8xf32>
    %18 = vector.extract_strided_slice %11 {offsets = [0, 8], sizes = [8, 8], strides = [1, 1]} : vector<8x32xf32> to vector<8x8xf32>
    %19 = vector.extract_strided_slice %11 {offsets = [0, 16], sizes = [8, 8], strides = [1, 1]} : vector<8x32xf32> to vector<8x8xf32>
    %20 = vector.extract_strided_slice %11 {offsets = [0, 24], sizes = [8, 8], strides = [1, 1]} : vector<8x32xf32> to vector<8x8xf32>
    %21 = vector.shape_cast %17 : vector<8x8xf32> to vector<1x8x8xf32>
    %22 = vector.shape_cast %18 : vector<8x8xf32> to vector<1x8x8xf32>
    %23 = vector.shape_cast %19 : vector<8x8xf32> to vector<1x8x8xf32>
    %24 = vector.shape_cast %20 : vector<8x8xf32> to vector<1x8x8xf32>
    %25 = tpu.concatenate %21, %22, %23, %24 in 0 : vector<1x8x8xf32>, vector<1x8x8xf32>, vector<1x8x8xf32>, vector<1x8x8xf32> -> vector<4x8x8xf32>
    %26 = vector.extract_strided_slice %16 {offsets = [0, 0], sizes = [8, 8], strides = [1, 1]} : vector<8x32xf32> to vector<8x8xf32>
    %27 = vector.extract_strided_slice %16 {offsets = [0, 8], sizes = [8, 8], strides = [1, 1]} : vector<8x32xf32> to vector<8x8xf32>
    %28 = vector.extract_strided_slice %16 {offsets = [0, 16], sizes = [8, 8], strides = [1, 1]} : vector<8x32xf32> to vector<8x8xf32>
    %29 = vector.extract_strided_slice %16 {offsets = [0, 24], sizes = [8, 8], strides = [1, 1]} : vector<8x32xf32> to vector<8x8xf32>
    %30 = vector.shape_cast %26 : vector<8x8xf32> to vector<1x8x8xf32>
    %31 = vector.shape_cast %27 : vector<8x8xf32> to vector<1x8x8xf32>
    %32 = vector.shape_cast %28 : vector<8x8xf32> to vector<1x8x8xf32>
    %33 = vector.shape_cast %29 : vector<8x8xf32> to vector<1x8x8xf32>
    %34 = tpu.concatenate %30, %31, %32, %33 in 0 : vector<1x8x8xf32>, vector<1x8x8xf32>, vector<1x8x8xf32>, vector<1x8x8xf32> -> vector<4x8x8xf32>
    %c0_15 = arith.constant 0 : index
    %c0_16 = arith.constant 0 : index
    %c0_17 = arith.constant 0 : index
    %35 = vector.load %arg15[%c0_15, %c0_16, %c0_17] : memref<4x8x8xf32, #tpu.memory_space<vmem>>, vector<4x8x8xf32>
    "tpu.trace_start"() <{level = 10 : i32, message = "hqd,hkd->hqk"}> : () -> ()
    %cst_18 = arith.constant dense<0.000000e+00> : vector<4x8x8xf32>
    %36 = tpu.matmul %35, %25, %cst_18 {dimension_numbers = #tpu.dot_dimension_numbers<[2], [2], [1], [1], [0, 0, 0, 1, 1, 1], [0], [0]>} : vector<4x8x8xf32>, vector<4x8x8xf32>, vector<4x8x8xf32> -> vector<4x8x8xf32>
    "tpu.trace_stop"() : () -> ()
    %c0_19 = arith.constant 0 : index
    %c0_20 = arith.constant 0 : index
    %c0_21 = arith.constant 0 : index
    %37 = vector.load %arg16[%c0_19, %c0_20, %c0_21] : memref<4x8x1xf32, #tpu.memory_space<vmem>>, vector<4x8x1xf32>
    %cst_22 = arith.constant dense<0xFF800000> : vector<4x8xf32>
    %38 = vector.multi_reduction <maximumf>, %36, %cst_22 [2] : vector<4x8x8xf32> to vector<4x8xf32>
    %39 = vector.shape_cast %38 : vector<4x8xf32> to vector<4x8x1xf32>
    %40 = arith.maximumf %37, %39 : vector<4x8x1xf32>
    %41 = arith.subf %37, %40 : vector<4x8x1xf32>
    %42 = math.exp %41 : vector<4x8x1xf32>
    %43 = vector.broadcast %40 : vector<4x8x1xf32> to vector<4x8x8xf32>
    %44 = arith.subf %36, %43 : vector<4x8x8xf32>
    %45 = math.exp %44 : vector<4x8x8xf32>
    %c0_23 = arith.constant 0 : index
    %c0_24 = arith.constant 0 : index
    %c0_25 = arith.constant 0 : index
    %46 = vector.load %arg17[%c0_23, %c0_24, %c0_25] : memref<4x8x1xf32, #tpu.memory_space<vmem>>, vector<4x8x1xf32>
    %47 = arith.mulf %42, %46 : vector<4x8x1xf32>
    %cst_26 = arith.constant dense<0.000000e+00> : vector<4x8xf32>
    %48 = vector.multi_reduction <add>, %45, %cst_26 [2] : vector<4x8x8xf32> to vector<4x8xf32>
    %49 = vector.shape_cast %48 : vector<4x8xf32> to vector<4x8x1xf32>
    %50 = arith.addf %47, %49 : vector<4x8x1xf32>
    %c0_27 = arith.constant 0 : index
    %c0_28 = arith.constant 0 : index
    %c0_29 = arith.constant 0 : index
    %51 = vector.load %arg17[%c0_27, %c0_28, %c0_29] : memref<4x8x1xf32, #tpu.memory_space<vmem>>, vector<4x8x1xf32>
    tpu.vector_store %arg17[%c0_27, %c0_28, %c0_29], %50 {strides = array<i32>} : memref<4x8x1xf32, #tpu.memory_space<vmem>>, vector<4x8x1xf32>,
    %c0_30 = arith.constant 0 : index
    %c0_31 = arith.constant 0 : index
    %c0_32 = arith.constant 0 : index
    %52 = vector.load %arg18[%c0_30, %c0_31, %c0_32] : memref<4x8x8xf32, #tpu.memory_space<vmem>>, vector<4x8x8xf32>
    %53 = vector.broadcast %42 : vector<4x8x1xf32> to vector<4x8x8xf32>
    %54 = arith.mulf %53, %52 : vector<4x8x8xf32>
    "tpu.trace_start"() <{level = 10 : i32, message = "hqk,hkd->hqd"}> : () -> ()
    %cst_33 = arith.constant dense<0.000000e+00> : vector<4x8x8xf32>
    %55 = tpu.matmul %45, %34, %cst_33 {dimension_numbers = #tpu.dot_dimension_numbers<[2], [1], [1], [2], [0, 0, 0, 1, 1, 2], [0], [0]>} : vector<4x8x8xf32>, vector<4x8x8xf32>, vector<4x8x8xf32> -> vector<4x8x8xf32>
    "tpu.trace_stop"() : () -> ()
    %56 = arith.addf %54, %55 : vector<4x8x8xf32>
    %c0_34 = arith.constant 0 : index
    %c0_35 = arith.constant 0 : index
    %c0_36 = arith.constant 0 : index
    %57 = vector.load %arg18[%c0_34, %c0_35, %c0_36] : memref<4x8x8xf32, #tpu.memory_space<vmem>>, vector<4x8x8xf32>
    tpu.vector_store %arg18[%c0_34, %c0_35, %c0_36], %56 {strides = array<i32>} : memref<4x8x8xf32, #tpu.memory_space<vmem>>, vector<4x8x8xf32>,
    %c0_37 = arith.constant 0 : index
    %c0_38 = arith.constant 0 : index
    %c0_39 = arith.constant 0 : index
    %58 = vector.load %arg16[%c0_37, %c0_38, %c0_39] : memref<4x8x1xf32, #tpu.memory_space<vmem>>, vector<4x8x1xf32>
    tpu.vector_store %arg16[%c0_37, %c0_38, %c0_39], %40 {strides = array<i32>} : memref<4x8x1xf32, #tpu.memory_space<vmem>>, vector<4x8x1xf32>,
    %c0_i32_40 = arith.constant 0 : i32
    %59 = arith.cmpi eq, %arg2, %c0_i32_40 : i32
    %60 = arith.extui %59 : i1 to i32
    %c0_i32_41 = arith.constant 0 : i32
    %61 = arith.cmpi ne, %60, %c0_i32_41 : i32
    scf.if %61 {
      %c0_42 = arith.constant 0 : index
      %c0_43 = arith.constant 0 : index
      %c0_44 = arith.constant 0 : index
      %62 = vector.load %arg17[%c0_42, %c0_43, %c0_44] : memref<4x8x1xf32, #tpu.memory_space<vmem>>, vector<4x8x1xf32>
      %63 = tpu.reciprocal %62 {approx = true} : vector<4x8x1xf32> -> vector<4x8x1xf32>
      %c0_45 = arith.constant 0 : index
      %c0_46 = arith.constant 0 : index
      %c0_47 = arith.constant 0 : index
      %64 = vector.load %arg18[%c0_45, %c0_46, %c0_47] : memref<4x8x8xf32, #tpu.memory_space<vmem>>, vector<1x8x8xf32>
      %65 = vector.shape_cast %64 : vector<1x8x8xf32> to vector<8x8xf32>
      %66 = vector.extract_strided_slice %63 {offsets = [0, 0, 0], sizes = [1, 8, 1], strides = [1, 1, 1]} : vector<4x8x1xf32> to vector<1x8x1xf32>
      %67 = vector.shape_cast %66 : vector<1x8x1xf32> to vector<8x1xf32>
      %68 = vector.broadcast %67 : vector<8x1xf32> to vector<8x8xf32>
      %69 = arith.mulf %65, %68 : vector<8x8xf32>
      %c1 = arith.constant 1 : index
      %c0_48 = arith.constant 0 : index
      %c0_49 = arith.constant 0 : index
      %70 = vector.load %arg18[%c1, %c0_48, %c0_49] : memref<4x8x8xf32, #tpu.memory_space<vmem>>, vector<1x8x8xf32>
      %71 = vector.shape_cast %70 : vector<1x8x8xf32> to vector<8x8xf32>
      %72 = vector.extract_strided_slice %63 {offsets = [1, 0, 0], sizes = [1, 8, 1], strides = [1, 1, 1]} : vector<4x8x1xf32> to vector<1x8x1xf32>
      %73 = vector.shape_cast %72 : vector<1x8x1xf32> to vector<8x1xf32>
      %74 = vector.broadcast %73 : vector<8x1xf32> to vector<8x8xf32>
      %75 = arith.mulf %71, %74 : vector<8x8xf32>
      %c2 = arith.constant 2 : index
      %c0_50 = arith.constant 0 : index
      %c0_51 = arith.constant 0 : index
      %76 = vector.load %arg18[%c2, %c0_50, %c0_51] : memref<4x8x8xf32, #tpu.memory_space<vmem>>, vector<1x8x8xf32>
      %77 = vector.shape_cast %76 : vector<1x8x8xf32> to vector<8x8xf32>
      %78 = vector.extract_strided_slice %63 {offsets = [2, 0, 0], sizes = [1, 8, 1], strides = [1, 1, 1]} : vector<4x8x1xf32> to vector<1x8x1xf32>
      %79 = vector.shape_cast %78 : vector<1x8x1xf32> to vector<8x1xf32>
      %80 = vector.broadcast %79 : vector<8x1xf32> to vector<8x8xf32>
      %81 = arith.mulf %77, %80 : vector<8x8xf32>
      %c3 = arith.constant 3 : index
      %c0_52 = arith.constant 0 : index
      %c0_53 = arith.constant 0 : index
      %82 = vector.load %arg18[%c3, %c0_52, %c0_53] : memref<4x8x8xf32, #tpu.memory_space<vmem>>, vector<1x8x8xf32>
      %83 = vector.shape_cast %82 : vector<1x8x8xf32> to vector<8x8xf32>
      %84 = vector.extract_strided_slice %63 {offsets = [3, 0, 0], sizes = [1, 8, 1], strides = [1, 1, 1]} : vector<4x8x1xf32> to vector<1x8x1xf32>
      %85 = vector.shape_cast %84 : vector<1x8x1xf32> to vector<8x1xf32>
      %86 = vector.broadcast %85 : vector<8x1xf32> to vector<8x8xf32>
      %87 = arith.mulf %83, %86 : vector<8x8xf32>
      %88 = tpu.concatenate %69, %75, %81, %87 in 1 : vector<8x8xf32>, vector<8x8xf32>, vector<8x8xf32>, vector<8x8xf32> -> vector<8x32xf32>
      %c0_54 = arith.constant 0 : index
      %c0_55 = arith.constant 0 : index
      %89 = vector.load %arg12[%c0_54, %c0_55] : memref<32x32xf32, #tpu.memory_space<vmem>>, vector<32x32xf32>
      %cst_56 = arith.constant dense<0.000000e+00> : vector<8x32xf32>
      %90 = tpu.matmul %88, %89, %cst_56 {dimension_numbers = #tpu.dot_dimension_numbers<[1], [0], [0], [1], [0, 0, 1, 1], [], []>} : vector<8x32xf32>, vector<32x32xf32>, vector<8x32xf32> -> vector<8x32xf32>
      %c0_57 = arith.constant 0 : index
      %c0_58 = arith.constant 0 : index
      %91 = vector.load %arg13[%c0_57, %c0_58] : memref<1x32xf32, #tpu.memory_space<vmem>>, vector<1x32xf32>
      %92 = vector.broadcast %91 : vector<1x32xf32> to vector<8x32xf32>
      %93 = arith.addf %90, %92 : vector<8x32xf32>
      %c0_59 = arith.constant 0 : index
      %c0_60 = arith.constant 0 : index
      %c0_61 = arith.constant 0 : index
      %94 = vector.load %arg14[%c0_59, %c0_60, %c0_61] : memref<1x8x32xf32, #tpu.memory_space<vmem>>, vector<1x8x32xf32>
      %95 = vector.shape_cast %94 : vector<1x8x32xf32> to vector<8x32xf32>
      %96 = vector.shape_cast %93 : vector<8x32xf32> to vector<1x8x32xf32>
      tpu.vector_store %arg14[%c0_59, %c0_60, %c0_61], %96 {strides = array<i32>} : memref<1x8x32xf32, #tpu.memory_space<vmem>>, vector<1x8x32xf32>,
    } else {
    }
    return
  }
  func.func @transform_0(%arg0: i32, %arg1: i32, %arg2: i32) -> (i32, i32, i32) {
    %c0_i32 = arith.constant 0 : i32
    %c0_i32_0 = arith.constant 0 : i32
    return %arg0, %arg1, %c0_i32 : i32, i32, i32
  }
  func.func @transform_1(%arg0: i32, %arg1: i32, %arg2: i32) -> (i32, i32, i32) {
    %c0_i32 = arith.constant 0 : i32
    %c0_i32_0 = arith.constant 0 : i32
    return %arg0, %arg2, %c0_i32 : i32, i32, i32
  }
  func.func @transform_2(%arg0: i32, %arg1: i32, %arg2: i32) -> (i32, i32, i32) {
    %c0_i32 = arith.constant 0 : i32
    %c0_i32_0 = arith.constant 0 : i32
    return %arg0, %arg2, %c0_i32 : i32, i32, i32
  }
  func.func @transform_3(%arg0: i32, %arg1: i32, %arg2: i32) -> (i32, i32) {
    %c0_i32 = arith.constant 0 : i32
    %c0_i32_0 = arith.constant 0 : i32
    %c0_i32_1 = arith.constant 0 : i32
    return %c0_i32, %c0_i32_0 : i32, i32
  }
  func.func @transform_4(%arg0: i32, %arg1: i32, %arg2: i32) -> (i32, i32) {
    %c0_i32 = arith.constant 0 : i32
    %c0_i32_0 = arith.constant 0 : i32
    %c0_i32_1 = arith.constant 0 : i32
    return %c0_i32, %c0_i32_0 : i32, i32
  }
  func.func @transform_5(%arg0: i32, %arg1: i32, %arg2: i32) -> (i32, i32) {
    %c0_i32 = arith.constant 0 : i32
    %c0_i32_0 = arith.constant 0 : i32
    %c0_i32_1 = arith.constant 0 : i32
    return %c0_i32, %c0_i32_0 : i32, i32
  }
  func.func @transform_6(%arg0: i32, %arg1: i32, %arg2: i32) -> (i32, i32) {
    %c0_i32 = arith.constant 0 : i32
    %c0_i32_0 = arith.constant 0 : i32
    %c0_i32_1 = arith.constant 0 : i32
    return %c0_i32, %c0_i32_0 : i32, i32
  }
  func.func @transform_7(%arg0: i32, %arg1: i32, %arg2: i32) -> (i32, i32) {
    %c0_i32 = arith.constant 0 : i32
    %c0_i32_0 = arith.constant 0 : i32
    %c0_i32_1 = arith.constant 0 : i32
    return %c0_i32, %c0_i32_0 : i32, i32
  }
  func.func @transform_8(%arg0: i32, %arg1: i32, %arg2: i32) -> (i32, i32) {
    %c0_i32 = arith.constant 0 : i32
    %c0_i32_0 = arith.constant 0 : i32
    %c0_i32_1 = arith.constant 0 : i32
    return %c0_i32, %c0_i32_0 : i32, i32
  }
  func.func @transform_9(%arg0: i32, %arg1: i32, %arg2: i32) -> (i32, i32) {
    %c0_i32 = arith.constant 0 : i32
    %c0_i32_0 = arith.constant 0 : i32
    %c0_i32_1 = arith.constant 0 : i32
    return %c0_i32, %c0_i32_0 : i32, i32
  }
  func.func @transform_10(%arg0: i32, %arg1: i32, %arg2: i32) -> (i32, i32) {
    %c0_i32 = arith.constant 0 : i32
    %c0_i32_0 = arith.constant 0 : i32
    %c0_i32_1 = arith.constant 0 : i32
    return %c0_i32, %c0_i32_0 : i32, i32
  }
  func.func @transform_11(%arg0: i32, %arg1: i32, %arg2: i32) -> (i32, i32, i32) {
    %c0_i32 = arith.constant 0 : i32
    %c0_i32_0 = arith.constant 0 : i32
    return %arg0, %arg1, %c0_i32 : i32, i32, i32
  }
}

</mosaic_0001>

<llo_original>
// kernel: tpu_custom_call.1
$region0: #{tpu_custom_call.1}
  #allocation0 [shape = 'u32[]', space=smem, size = 0x4, offset = 0x4, fixed_abs, tag = 'smem constant byte address 0x4 - core index']
  #allocation1 [shape = 'u32[144,128]{1,0:T(1,128)}', space=vmem, size = 0x12000, scoped, tag = 'internal scratch']
  #allocation2 [shape = 'f32[4,8,8]{2,1,0:T(8,128)}', space=vmem, size = 0x4000, scoped, tag = 'scratch operand']
  #allocation3 [shape = 'f32[4,8,1]{2,1,0:T(8,128)}', space=vmem, size = 0x4000, scoped, tag = 'scratch operand']
  #allocation4 [shape = 'f32[4,8,1]{2,1,0:T(8,128)}', space=vmem, size = 0x4000, scoped, tag = 'scratch operand']
  #allocation5 [shape = 'f32[4,8,8]{2,1,0:T(8,128)}', space=vmem, size = 0x4000, scoped, tag = 'scratch operand']
  %s0 = inlined_call_operand.hbm [shape: f32[2,8,32], index: 0, kind: input, shape index: {}]
  %s1 = inlined_call_operand.hbm [shape: f32[2,8,32], index: 1, kind: input, shape index: {}]
  %s2 = inlined_call_operand.hbm [shape: f32[2,8,32], index: 2, kind: input, shape index: {}]
  %s3 = inlined_call_operand.hbm [shape: f32[32,32], index: 3, kind: input, shape index: {}]
  %s4 = inlined_call_operand.vmem [shape: f32[1,32], index: 4, kind: input, shape index: {}]
  %s5 = inlined_call_operand.hbm [shape: f32[32,32], index: 5, kind: input, shape index: {}]
  %s6 = inlined_call_operand.vmem [shape: f32[1,32], index: 6, kind: input, shape index: {}]
  %s7 = inlined_call_operand.hbm [shape: f32[32,32], index: 7, kind: input, shape index: {}]
  %s8 = inlined_call_operand.vmem [shape: f32[1,32], index: 8, kind: input, shape index: {}]
  %s9 = inlined_call_operand.hbm [shape: f32[32,32], index: 9, kind: input, shape index: {}]
  %s10 = inlined_call_operand.vmem [shape: f32[1,32], index: 10, kind: input, shape index: {}]
  %s11 = inlined_call_operand.hbm [shape: f32[2,8,32], index: 11, kind: output, shape index: {}]
  %s12 = sld [smem:[#allocation0]]
  $region113: #{tpu_custom_call.1} parent=0
    _
  %s14 = ssub.s32 1, %s12
  %s15 = scalar_select 0, %s14, %s12
  $region1: #{tpu_custom_call.1} parent=0
    #allocation6 [shape = 'u8[8192]{0}', space=vmem, size = 0x2000, scoped, tag = 'input window, operand 0']
    #allocation7 [shape = 's32[2]{0}', space=sflag, size = 0x8, scoped, tag = 'scoped memory for tpu_custom_call.1']
    #allocation8 [shape = 's32[2]{0}', space=sflag, size = 0x8, scoped, tag = 'scoped memory for tpu_custom_call.1']
    #allocation9 [shape = 'u8[8192]{0}', space=vmem, size = 0x2000, scoped, tag = 'input window, operand 1']
    #allocation10 [shape = 's32[2]{0}', space=sflag, size = 0x8, scoped, tag = 'scoped memory for tpu_custom_call.1']
    #allocation11 [shape = 'u8[8192]{0}', space=vmem, size = 0x2000, scoped, tag = 'input window, operand 2']
    #allocation12 [shape = 'u8[16384]{0}', space=vmem, size = 0x4000, scoped, tag = 'input window, operand 3, single buffered']
    #allocation13 [shape = 's32[1]{0}', space=sflag, size = 0x4, scoped, tag = 'scoped memory for tpu_custom_call.1']
    #allocation14 [shape = 'u8[16384]{0}', space=vmem, size = 0x4000, scoped, tag = 'input window, operand 5, single buffered']
    #allocation15 [shape = 'u8[16384]{0}', space=vmem, size = 0x4000, scoped, tag = 'input window, operand 7, single buffered']
    #allocation16 [shape = 's32[1]{0}', space=sflag, size = 0x4, scoped, tag = 'scoped memory for tpu_custom_call.1']
    #allocation17 [shape = 'u8[16384]{0}', space=vmem, size = 0x4000, scoped, tag = 'input window, operand 9, single buffered']
    #allocation18 [shape = 'u8[8192]{0}', space=vmem, size = 0x2000, scoped, tag = 'output window, operand 0']
    %16 = vsyncpa [#allocation7], 0
    %s17 = scalar_lea.sflag [#allocation7], 1
    %18 = vsyncpa %s17, 0
    %19 = vsyncpa [#allocation10], 0
    %s20 = scalar_lea.sflag [#allocation10], 1
    %21 = vsyncpa %s20, 0
    %22 = vsyncpa [#allocation13], 0
    %23 = vsyncpa [#allocation16], 0
    %24 = vsyncpa [#allocation8], 0
    %s25 = scalar_lea.sflag [#allocation8], 1
    %26 = vsyncpa %s25, 0
    loop: start=0, step=1, limit=4
    $region2: #{tpu_custom_call.1} parent=1 // loop_pre_header
      _
    $region3: #{tpu_custom_call.1} parent=1 // loop_header
      %s28 = sphi 0, %s32
      %p29 = scmp.ge.s32.totalorder %s28, 4
      %s35 = sphi 0, %s54
      %s36 = sphi 0, %s50
      %s37 = sphi 0, %s46
      %s38 = sphi 0, %s35
      %s39 = sphi 0, %s36
      %s40 = sphi 0, %s37
      %s41 = sphi 0, %s38
      %s42 = sphi 0, %s39
      %s43 = sphi 0, %s40
      %s59 = sphi 0, %s61
      %s62 = sphi 0, %s59
      %s63 = sphi 0, %s62
      %s79 = sphi 0, %s63
      %s87 = sphi 0, %s89
      %s90 = sphi 0, %s87
      %s91 = sphi 0, %s90
      %s107 = sphi 0, %s91
      %s115 = sphi 0, %s117
      %s118 = sphi 0, %s115
      %s119 = sphi 0, %s118
      %s135 = sphi 0, %s119
      %s139 = sphi 0, %s139
      %s141 = sphi 0, %s139
      %s142 = sphi 0, %s141
      %s156 = sphi 0, %s142
      %s160 = sphi 0, %s160
      %s162 = sphi 0, %s160
      %s163 = sphi 0, %s162
      %s177 = sphi 0, %s163
      %s181 = sphi 0, %s181
      %s183 = sphi 0, %s181
      %s184 = sphi 0, %s183
      %s198 = sphi 0, %s184
      %s202 = sphi 0, %s202
      %s204 = sphi 0, %s202
      %s205 = sphi 0, %s204
      %s219 = sphi 0, %s205
      %s223 = sphi 0, %s223
      %s225 = sphi 0, %s223
      %s226 = sphi 0, %s225
      %s240 = sphi 0, %s226
      %s244 = sphi 0, %s244
      %s246 = sphi 0, %s244
      %s247 = sphi 0, %s246
      %s261 = sphi 0, %s247
      %s265 = sphi 0, %s265
      %s267 = sphi 0, %s265
      %s268 = sphi 0, %s267
      %s282 = sphi 0, %s268
      %s286 = sphi 0, %s286
      %s288 = sphi 0, %s286
      %s289 = sphi 0, %s288
      %s303 = sphi 0, %s289
      %s311 = sphi 0, %s313
      %s314 = sphi 0, %s311
      %s315 = sphi 0, %s314
      %s331 = sphi 0, %s315
    $region4: #{tpu_custom_call.1} parent=1 // loop_header_branch
      %31 = sbr.rel (%p29) target = $region8
    $region5: #{tpu_custom_call.1} parent=1 // loop_body
      %s33 = ssub.s32 %s28, 1
      %s34 = ssub.s32 %s28, 2
      %s44 = sadd.s32 1, %s37
      %p45 = scmp.ge.s32.totalorder %s44, 1
      %s46 = scalar_select %p45, 0, %s44
      %s47 = sadd.s32 1, %s36
      %s48 = scalar_select %p45, %s47, %s36
      %p49 = scmp.ge.s32.totalorder %s48, 1
      %s50 = scalar_select %p49, 0, %s48
      %s51 = sadd.s32 1, %s35
      %s52 = scalar_select %p49, %s51, %s35
      %p53 = scmp.ge.s32.totalorder %s52, 2
      %s54 = scalar_select %p53, 0, %s52
      %s55 = ssub.s32 %s35, %s54
      %s56 = ssub.s32 %s36, %s50
      %s57 = sor.u32 %s55, %s56
      %p58 = scmp.eq.s32.totalorder %s57, 0
      %s60 = sadd.s32 %s59, 1
      %s61 = scalar_select %p58, %s59, %s60
      %p64 = pneg %p58
      %p65 = scmp.eq.s32.totalorder %s28, 1
      %p66 = por %p64, %p65
      %p67 = scmp.ne.s32.totalorder %s59, %s62
      %p68 = scmp.eq.s32.totalorder %s28, 0
      %p69 = por %p67, %p68
      %p70 = scmp.ne.s32.totalorder %s59, %s62
      %p71 = scmp.eq.s32.totalorder %s33, 1
      %p72 = por %p70, %p71
      %p73 = scmp.ne.s32.totalorder %s62, %s63
      %p74 = scmp.eq.s32.totalorder %s33, 0
      %p75 = por %p73, %p74
      %p76 = scmp.ne.s32.totalorder %s62, %s63
      %p77 = scmp.eq.s32.totalorder %s34, 1
      %p78 = por %p76, %p77
      %p80 = scmp.ne.s32.totalorder %s63, %s79
      %p81 = scmp.eq.s32.totalorder %s34, 0
      %p82 = por %p80, %p81
      %s83 = ssub.s32 %s35, %s54
      %s84 = ssub.s32 %s37, %s46
      %s85 = sor.u32 %s83, %s84
      %p86 = scmp.eq.s32.totalorder %s85, 0
      %s88 = sadd.s32 %s87, 1
      %s89 = scalar_select %p86, %s87, %s88
      %p92 = pneg %p86
      %p93 = scmp.eq.s32.totalorder %s28, 1
      %p94 = por %p92, %p93
      %p95 = scmp.ne.s32.totalorder %s87, %s90
      %p96 = scmp.eq.s32.totalorder %s28, 0
      %p97 = por %p95, %p96
      %p98 = scmp.ne.s32.totalorder %s87, %s90
      %p99 = scmp.eq.s32.totalorder %s33, 1
      %p100 = por %p98, %p99
      %p101 = scmp.ne.s32.totalorder %s90, %s91
      %p102 = scmp.eq.s32.totalorder %s33, 0
      %p103 = por %p101, %p102
      %p104 = scmp.ne.s32.totalorder %s90, %s91
      %p105 = scmp.eq.s32.totalorder %s34, 1
      %p106 = por %p104, %p105
      %p108 = scmp.ne.s32.totalorder %s91, %s107
      %p109 = scmp.eq.s32.totalorder %s34, 0
      %p110 = por %p108, %p109
      %s111 = ssub.s32 %s35, %s54
      %s112 = ssub.s32 %s37, %s46
      %s113 = sor.u32 %s111, %s112
      %p114 = scmp.eq.s32.totalorder %s113, 0
      %s116 = sadd.s32 %s115, 1
      %s117 = scalar_select %p114, %s115, %s116
      %p120 = pneg %p114
      %p121 = scmp.eq.s32.totalorder %s28, 1
      %p122 = por %p120, %p121
      %p123 = scmp.ne.s32.totalorder %s115, %s118
      %p124 = scmp.eq.s32.totalorder %s28, 0
      %p125 = por %p123, %p124
      %p126 = scmp.ne.s32.totalorder %s115, %s118
      %p127 = scmp.eq.s32.totalorder %s33, 1
      %p128 = por %p126, %p127
      %p129 = scmp.ne.s32.totalorder %s118, %s119
      %p130 = scmp.eq.s32.totalorder %s33, 0
      %p131 = por %p129, %p130
      %p132 = scmp.ne.s32.totalorder %s118, %s119
      %p133 = scmp.eq.s32.totalorder %s34, 1
      %p134 = por %p132, %p133
      %p136 = scmp.ne.s32.totalorder %s119, %s135
      %p137 = scmp.eq.s32.totalorder %s34, 0
      %p138 = por %p136, %p137
      %s140 = sadd.s32 %s139, 1
      %p143 = scmp.eq.s32.totalorder %s28, 1
      %p144 = scmp.ne.s32.totalorder %s139, %s141
      %p145 = scmp.eq.s32.totalorder %s28, 0
      %p146 = por %p144, %p145
      %p147 = scmp.ne.s32.totalorder %s139, %s141
      %p148 = scmp.eq.s32.totalorder %s33, 1
      %p149 = por %p147, %p148
      %p150 = scmp.ne.s32.totalorder %s141, %s142
      %p151 = scmp.eq.s32.totalorder %s33, 0
      %p152 = por %p150, %p151
      %p153 = scmp.ne.s32.totalorder %s141, %s142
      %p154 = scmp.eq.s32.totalorder %s34, 1
      %p155 = por %p153, %p154
      %p157 = scmp.ne.s32.totalorder %s142, %s156
      %p158 = scmp.eq.s32.totalorder %s34, 0
      %p159 = por %p157, %p158
      %s161 = sadd.s32 %s160, 1
      %p164 = scmp.eq.s32.totalorder %s28, 1
      %p165 = scmp.ne.s32.totalorder %s160, %s162
      %p166 = scmp.eq.s32.totalorder %s28, 0
      %p167 = por %p165, %p166
      %p168 = scmp.ne.s32.totalorder %s160, %s162
      %p169 = scmp.eq.s32.totalorder %s33, 1
      %p170 = por %p168, %p169
      %p171 = scmp.ne.s32.totalorder %s162, %s163
      %p172 = scmp.eq.s32.totalorder %s33, 0
      %p173 = por %p171, %p172
      %p174 = scmp.ne.s32.totalorder %s162, %s163
      %p175 = scmp.eq.s32.totalorder %s34, 1
      %p176 = por %p174, %p175
      %p178 = scmp.ne.s32.totalorder %s163, %s177
      %p179 = scmp.eq.s32.totalorder %s34, 0
      %p180 = por %p178, %p179
      %s182 = sadd.s32 %s181, 1
      %p185 = scmp.eq.s32.totalorder %s28, 1
      %p186 = scmp.ne.s32.totalorder %s181, %s183
      %p187 = scmp.eq.s32.totalorder %s28, 0
      %p188 = por %p186, %p187
      %p189 = scmp.ne.s32.totalorder %s181, %s183
      %p190 = scmp.eq.s32.totalorder %s33, 1
      %p191 = por %p189, %p190
      %p192 = scmp.ne.s32.totalorder %s183, %s184
      %p193 = scmp.eq.s32.totalorder %s33, 0
      %p194 = por %p192, %p193
      %p195 = scmp.ne.s32.totalorder %s183, %s184
      %p196 = scmp.eq.s32.totalorder %s34, 1
      %p197 = por %p195, %p196
      %p199 = scmp.ne.s32.totalorder %s184, %s198
      %p200 = scmp.eq.s32.totalorder %s34, 0
      %p201 = por %p199, %p200
      %s203 = sadd.s32 %s202, 1
      %p206 = scmp.eq.s32.totalorder %s28, 1
      %p207 = scmp.ne.s32.totalorder %s202, %s204
      %p208 = scmp.eq.s32.totalorder %s28, 0
      %p209 = por %p207, %p208
      %p210 = scmp.ne.s32.totalorder %s202, %s204
      %p211 = scmp.eq.s32.totalorder %s33, 1
      %p212 = por %p210, %p211
      %p213 = scmp.ne.s32.totalorder %s204, %s205
      %p214 = scmp.eq.s32.totalorder %s33, 0
      %p215 = por %p213, %p214
      %p216 = scmp.ne.s32.totalorder %s204, %s205
      %p217 = scmp.eq.s32.totalorder %s34, 1
      %p218 = por %p216, %p217
      %p220 = scmp.ne.s32.totalorder %s205, %s219
      %p221 = scmp.eq.s32.totalorder %s34, 0
      %p222 = por %p220, %p221
      %s224 = sadd.s32 %s223, 1
      %p227 = scmp.eq.s32.totalorder %s28, 1
      %p228 = scmp.ne.s32.totalorder %s223, %s225
      %p229 = scmp.eq.s32.totalorder %s28, 0
      %p230 = por %p228, %p229
      %p231 = scmp.ne.s32.totalorder %s223, %s225
      %p232 = scmp.eq.s32.totalorder %s33, 1
      %p233 = por %p231, %p232
      %p234 = scmp.ne.s32.totalorder %s225, %s226
      %p235 = scmp.eq.s32.totalorder %s33, 0
      %p236 = por %p234, %p235
      %p237 = scmp.ne.s32.totalorder %s225, %s226
      %p238 = scmp.eq.s32.totalorder %s34, 1
      %p239 = por %p237, %p238
      %p241 = scmp.ne.s32.totalorder %s226, %s240
      %p242 = scmp.eq.s32.totalorder %s34, 0
      %p243 = por %p241, %p242
      %s245 = sadd.s32 %s244, 1
      %p248 = scmp.eq.s32.totalorder %s28, 1
      %p249 = scmp.ne.s32.totalorder %s244, %s246
      %p250 = scmp.eq.s32.totalorder %s28, 0
      %p251 = por %p249, %p250
      %p252 = scmp.ne.s32.totalorder %s244, %s246
      %p253 = scmp.eq.s32.totalorder %s33, 1
      %p254 = por %p252, %p253
      %p255 = scmp.ne.s32.totalorder %s246, %s247
      %p256 = scmp.eq.s32.totalorder %s33, 0
      %p257 = por %p255, %p256
      %p258 = scmp.ne.s32.totalorder %s246, %s247
      %p259 = scmp.eq.s32.totalorder %s34, 1
      %p260 = por %p258, %p259
      %p262 = scmp.ne.s32.totalorder %s247, %s261
      %p263 = scmp.eq.s32.totalorder %s34, 0
      %p264 = por %p262, %p263
      %s266 = sadd.s32 %s265, 1
      %p269 = scmp.eq.s32.totalorder %s28, 1
      %p270 = scmp.ne.s32.totalorder %s265, %s267
      %p271 = scmp.eq.s32.totalorder %s28, 0
      %p272 = por %p270, %p271
      %p273 = scmp.ne.s32.totalorder %s265, %s267
      %p274 = scmp.eq.s32.totalorder %s33, 1
      %p275 = por %p273, %p274
      %p276 = scmp.ne.s32.totalorder %s267, %s268
      %p277 = scmp.eq.s32.totalorder %s33, 0
      %p278 = por %p276, %p277
      %p279 = scmp.ne.s32.totalorder %s267, %s268
      %p280 = scmp.eq.s32.totalorder %s34, 1
      %p281 = por %p279, %p280
      %p283 = scmp.ne.s32.totalorder %s268, %s282
      %p284 = scmp.eq.s32.totalorder %s34, 0
      %p285 = por %p283, %p284
      %s287 = sadd.s32 %s286, 1
      %p290 = scmp.eq.s32.totalorder %s28, 1
      %p291 = scmp.ne.s32.totalorder %s286, %s288
      %p292 = scmp.eq.s32.totalorder %s28, 0
      %p293 = por %p291, %p292
      %p294 = scmp.ne.s32.totalorder %s286, %s288
      %p295 = scmp.eq.s32.totalorder %s33, 1
      %p296 = por %p294, %p295
      %p297 = scmp.ne.s32.totalorder %s288, %s289
      %p298 = scmp.eq.s32.totalorder %s33, 0
      %p299 = por %p297, %p298
      %p300 = scmp.ne.s32.totalorder %s288, %s289
      %p301 = scmp.eq.s32.totalorder %s34, 1
      %p302 = por %p300, %p301
      %p304 = scmp.ne.s32.totalorder %s289, %s303
      %p305 = scmp.eq.s32.totalorder %s34, 0
      %p306 = por %p304, %p305
      %s307 = ssub.s32 %s35, %s54
      %s308 = ssub.s32 %s36, %s50
      %s309 = sor.u32 %s307, %s308
      %p310 = scmp.eq.s32.totalorder %s309, 0
      %s312 = sadd.s32 %s311, 1
      %s313 = scalar_select %p310, %s311, %s312
      %p316 = pneg %p310
      %p317 = scmp.eq.s32.totalorder %s28, 1
      %p318 = por %p316, %p317
      %p319 = scmp.ne.s32.totalorder %s311, %s314
      %p320 = scmp.eq.s32.totalorder %s28, 0
      %p321 = por %p319, %p320
      %p322 = scmp.ne.s32.totalorder %s311, %s314
      %p323 = scmp.eq.s32.totalorder %s33, 1
      %p324 = por %p322, %p323
      %p325 = scmp.ne.s32.totalorder %s314, %s315
      %p326 = scmp.eq.s32.totalorder %s33, 0
      %p327 = por %p325, %p326
      %p328 = scmp.ne.s32.totalorder %s314, %s315
      %p329 = scmp.eq.s32.totalorder %s34, 1
      %p330 = por %p328, %p329
      %p332 = scmp.ne.s32.totalorder %s315, %s331
      %p333 = scmp.eq.s32.totalorder %s34, 0
      %p334 = por %p332, %p333
      %p335 = scmp.le.s32.totalorder 1, %s28
      %p336 = scmp.lt.s32.totalorder %s28, 3
      %p337 = pnand %p335, %p336
      %p338 = pneg %p337
      // Predicated region
      $region9: #{tpu_custom_call.1} parent=5 // pred_check
        _
      $region10: #{tpu_custom_call.1} parent=5 // pred_check_branch
        %340 = sbr.rel (%p337) target = $region12
      $region11: #{tpu_custom_call.1} parent=5 // pred_region
        %s341 = ssub.s32 %s28, 1
        // Predicated region
        $region13: #{tpu_custom_call.1} parent=11 // pred_check
          %p342 = pneg %p152
        $region14: #{tpu_custom_call.1} parent=11 // pred_check_branch
          %344 = sbr.rel (%p342) target = $region16
        $region15: #{tpu_custom_call.1} parent=11 // pred_region
          %s346 = ssub.s32 512, 512
          %347 = vsyncadd [#allocation13], %s346
          %s348 = sshll.u32 [#allocation12], 4
          %s349 = int_to_ptr.vmem [resolvable:$true] %s348
          %354 = dma.hbm_to_vmem [thread:$0]  %s3, 512, %s349, [#allocation13], 128, 128, 8
        $region16: #{tpu_custom_call.1} parent=11 // pred_fallthru
          _
        // Predicated region
        $region17: #{tpu_custom_call.1} parent=11 // pred_check
          %p355 = pneg %p173
        $region18: #{tpu_custom_call.1} parent=11 // pred_check_branch
          %357 = sbr.rel (%p355) target = $region20
        $region19: #{tpu_custom_call.1} parent=11 // pred_region
          _
        $region20: #{tpu_custom_call.1} parent=11 // pred_fallthru
          _
        // Predicated region
        $region21: #{tpu_custom_call.1} parent=11 // pred_check
          %p358 = pneg %p194
        $region22: #{tpu_custom_call.1} parent=11 // pred_check_branch
          %360 = sbr.rel (%p358) target = $region24
        $region23: #{tpu_custom_call.1} parent=11 // pred_region
          %s362 = ssub.s32 512, 512
          %363 = vsyncadd [#allocation13], %s362
          %s364 = sshll.u32 [#allocation14], 4
          %s365 = int_to_ptr.vmem [resolvable:$true] %s364
          %370 = dma.hbm_to_vmem [thread:$0]  %s5, 512, %s365, [#allocation13], 128, 128, 8
        $region24: #{tpu_custom_call.1} parent=11 // pred_fallthru
          _
        // Predicated region
        $region25: #{tpu_custom_call.1} parent=11 // pred_check
          %p371 = pneg %p215
        $region26: #{tpu_custom_call.1} parent=11 // pred_check_branch
          %373 = sbr.rel (%p371) target = $region28
        $region27: #{tpu_custom_call.1} parent=11 // pred_region
          _
        $region28: #{tpu_custom_call.1} parent=11 // pred_fallthru
          _
        // Predicated region
        $region29: #{tpu_custom_call.1} parent=11 // pred_check
          %p374 = pneg %p236
        $region30: #{tpu_custom_call.1} parent=11 // pred_check_branch
          %376 = sbr.rel (%p374) target = $region32
        $region31: #{tpu_custom_call.1} parent=11 // pred_region
          %s378 = ssub.s32 512, 512
          %379 = vsyncadd [#allocation16], %s378
          %s380 = sshll.u32 [#allocation15], 4
          %s381 = int_to_ptr.vmem [resolvable:$true] %s380
          %386 = dma.hbm_to_vmem [thread:$0]  %s7, 512, %s381, [#allocation16], 128, 128, 8
        $region32: #{tpu_custom_call.1} parent=11 // pred_fallthru
          _
        // Predicated region
        $region33: #{tpu_custom_call.1} parent=11 // pred_check
          %p387 = pneg %p257
        $region34: #{tpu_custom_call.1} parent=11 // pred_check_branch
          %389 = sbr.rel (%p387) target = $region36
        $region35: #{tpu_custom_call.1} parent=11 // pred_region
          _
        $region36: #{tpu_custom_call.1} parent=11 // pred_fallthru
          _
        // Predicated region
        $region37: #{tpu_custom_call.1} parent=11 // pred_check
          %p390 = pneg %p278
        $region38: #{tpu_custom_call.1} parent=11 // pred_check_branch
          %392 = sbr.rel (%p390) target = $region40
        $region39: #{tpu_custom_call.1} parent=11 // pred_region
          %s394 = ssub.s32 512, 512
          %395 = vsyncadd [#allocation16], %s394
          %s396 = sshll.u32 [#allocation17], 4
          %s397 = int_to_ptr.vmem [resolvable:$true] %s396
          %402 = dma.hbm_to_vmem [thread:$0]  %s9, 512, %s397, [#allocation16], 128, 128, 8
        $region40: #{tpu_custom_call.1} parent=11 // pred_fallthru
          _
        // Predicated region
        $region41: #{tpu_custom_call.1} parent=11 // pred_check
          %p403 = pneg %p299
        $region42: #{tpu_custom_call.1} parent=11 // pred_check_branch
          %405 = sbr.rel (%p403) target = $region44
        $region43: #{tpu_custom_call.1} parent=11 // pred_region
          _
        $region44: #{tpu_custom_call.1} parent=11 // pred_fallthru
          _
      $region12: #{tpu_custom_call.1} parent=5 // pred_fallthru
        _
      %p406 = scmp.lt.s32.totalorder %s28, 2
      // Predicated region
      $region45: #{tpu_custom_call.1} parent=5 // pred_check
        %p407 = pneg %p406
      $region46: #{tpu_custom_call.1} parent=5 // pred_check_branch
        %409 = sbr.rel (%p407) target = $region48
      $region47: #{tpu_custom_call.1} parent=5 // pred_region
        // Predicated region
        $region49: #{tpu_custom_call.1} parent=47 // pred_check
          %p410 = pneg %p69
        $region50: #{tpu_custom_call.1} parent=47 // pred_check_branch
          %412 = sbr.rel (%p410) target = $region52
        $region51: #{tpu_custom_call.1} parent=47 // pred_region
          %s413 = sand.u32 %s59, 1
          %s414 = scalar_lea.sflag [#allocation7], %s413
          %s415 = sand.u32 %s59, 1
          %s416 = smul.addr %s415, 8
          %s417 = scalar_lea.vmem [#allocation6], %s416
          %s419 = ssub.s32 128, 128
          %420 = vsyncadd %s414, %s419
          %s421 = sadd.s32 %s36, %s35
          %s422 = smul.addr %s421, 128
          %s423 = scalar_lea.hbm %s0, %s422
          %s425 = sshll.u32 %s417, 4
          %s426 = int_to_ptr.vmem [resolvable:$true] %s425
          %428 = dma.hbm_to_vmem [thread:$0]  %s423, 128, %s426, %s414
        $region52: #{tpu_custom_call.1} parent=47 // pred_fallthru
          _
        // Predicated region
        $region53: #{tpu_custom_call.1} parent=47 // pred_check
          %p429 = pneg %p97
        $region54: #{tpu_custom_call.1} parent=47 // pred_check_branch
          %431 = sbr.rel (%p429) target = $region56
        $region55: #{tpu_custom_call.1} parent=47 // pred_region
          %s432 = sand.u32 %s28, 1
          %s433 = scalar_lea.sflag [#allocation10], %s432
          %s434 = sand.u32 %s87, 1
          %s435 = smul.addr %s434, 8
          %s436 = scalar_lea.vmem [#allocation9], %s435
          %s438 = ssub.s32 128, 128
          %439 = vsyncadd %s433, %s438
          %s440 = sadd.s32 %s37, %s35
          %s441 = smul.addr %s440, 128
          %s442 = scalar_lea.hbm %s1, %s441
          %s444 = sshll.u32 %s436, 4
          %s445 = int_to_ptr.vmem [resolvable:$true] %s444
          %447 = dma.hbm_to_vmem [thread:$0]  %s442, 128, %s445, %s433
        $region56: #{tpu_custom_call.1} parent=47 // pred_fallthru
          _
        // Predicated region
        $region57: #{tpu_custom_call.1} parent=47 // pred_check
          %p448 = pneg %p125
        $region58: #{tpu_custom_call.1} parent=47 // pred_check_branch
          %450 = sbr.rel (%p448) target = $region60
        $region59: #{tpu_custom_call.1} parent=47 // pred_region
          %s451 = sand.u32 %s28, 1
          %s452 = scalar_lea.sflag [#allocation10], %s451
          %s453 = sand.u32 %s115, 1
          %s454 = smul.addr %s453, 8
          %s455 = scalar_lea.vmem [#allocation11], %s454
          %s457 = ssub.s32 128, 128
          %458 = vsyncadd %s452, %s457
          %s459 = sadd.s32 %s37, %s35
          %s460 = smul.addr %s459, 128
          %s461 = scalar_lea.hbm %s2, %s460
          %s463 = sshll.u32 %s455, 4
          %s464 = int_to_ptr.vmem [resolvable:$true] %s463
          %466 = dma.hbm_to_vmem [thread:$0]  %s461, 128, %s464, %s452
        $region60: #{tpu_custom_call.1} parent=47 // pred_fallthru
          _
      $region48: #{tpu_custom_call.1} parent=5 // pred_fallthru
        _
      %p467 = scmp.le.s32.totalorder 1, %s28
      %p468 = scmp.lt.s32.totalorder %s28, 3
      %p469 = pnand %p467, %p468
      %p470 = pneg %p469
      // Predicated region
      $region61: #{tpu_custom_call.1} parent=5 // pred_check
        _
      $region62: #{tpu_custom_call.1} parent=5 // pred_check_branch
        %472 = sbr.rel (%p469) target = $region64
      $region63: #{tpu_custom_call.1} parent=5 // pred_region
        %s473 = ssub.s32 %s28, 1
        %s474 = sand.u32 %s62, 1
        %s475 = scalar_lea.sflag [#allocation7], %s474
        %s476 = sand.u32 %s62, 1
        %s477 = smul.addr %s476, 8
        %s478 = scalar_lea.vmem [#allocation6], %s477
        // Predicated region
        $region65: #{tpu_custom_call.1} parent=63 // pred_check
          %p479 = pneg %p75
        $region66: #{tpu_custom_call.1} parent=63 // pred_check_branch
          %481 = sbr.rel (%p479) target = $region68
        $region67: #{tpu_custom_call.1} parent=63 // pred_region
          %482 = dma.done %s475, 128
        $region68: #{tpu_custom_call.1} parent=63 // pred_fallthru
          _
        %s483 = sand.u32 %s33, 1
        %s484 = scalar_lea.sflag [#allocation10], %s483
        %s485 = sand.u32 %s90, 1
        %s486 = smul.addr %s485, 8
        %s487 = scalar_lea.vmem [#allocation9], %s486
        // Predicated region
        $region69: #{tpu_custom_call.1} parent=63 // pred_check
          %p488 = pneg %p103
        $region70: #{tpu_custom_call.1} parent=63 // pred_check_branch
          %490 = sbr.rel (%p488) target = $region72
        $region71: #{tpu_custom_call.1} parent=63 // pred_region
          %491 = dma.done %s484, 128
        $region72: #{tpu_custom_call.1} parent=63 // pred_fallthru
          _
        %s492 = sand.u32 %s33, 1
        %s493 = scalar_lea.sflag [#allocation10], %s492
        %s494 = sand.u32 %s118, 1
        %s495 = smul.addr %s494, 8
        %s496 = scalar_lea.vmem [#allocation11], %s495
        // Predicated region
        $region73: #{tpu_custom_call.1} parent=63 // pred_check
          %p497 = pneg %p131
        $region74: #{tpu_custom_call.1} parent=63 // pred_check_branch
          %499 = sbr.rel (%p497) target = $region76
        $region75: #{tpu_custom_call.1} parent=63 // pred_region
          %500 = dma.done %s493, 128
        $region76: #{tpu_custom_call.1} parent=63 // pred_fallthru
          _
        // Predicated region
        $region77: #{tpu_custom_call.1} parent=63 // pred_check
          %p501 = pneg %p152
        $region78: #{tpu_custom_call.1} parent=63 // pred_check_branch
          %503 = sbr.rel (%p501) target = $region80
        $region79: #{tpu_custom_call.1} parent=63 // pred_region
          %504 = dma.done [#allocation13], 512
        $region80: #{tpu_custom_call.1} parent=63 // pred_fallthru
          _
        // Predicated region
        $region81: #{tpu_custom_call.1} parent=63 // pred_check
          %p505 = pneg %p194
        $region82: #{tpu_custom_call.1} parent=63 // pred_check_branch
          %507 = sbr.rel (%p505) target = $region84
        $region83: #{tpu_custom_call.1} parent=63 // pred_region
          %508 = dma.done [#allocation13], 512
        $region84: #{tpu_custom_call.1} parent=63 // pred_fallthru
          _
        // Predicated region
        $region85: #{tpu_custom_call.1} parent=63 // pred_check
          %p509 = pneg %p236
        $region86: #{tpu_custom_call.1} parent=63 // pred_check_branch
          %511 = sbr.rel (%p509) target = $region88
        $region87: #{tpu_custom_call.1} parent=63 // pred_region
          %512 = dma.done [#allocation16], 512
        $region88: #{tpu_custom_call.1} parent=63 // pred_fallthru
          _
        // Predicated region
        $region89: #{tpu_custom_call.1} parent=63 // pred_check
          %p513 = pneg %p278
        $region90: #{tpu_custom_call.1} parent=63 // pred_check_branch
          %515 = sbr.rel (%p513) target = $region92
        $region91: #{tpu_custom_call.1} parent=63 // pred_region
          %516 = dma.done [#allocation16], 512
        $region92: #{tpu_custom_call.1} parent=63 // pred_fallthru
          _
        %s517 = sand.u32 %s62, 1
        %s518 = scalar_lea.sflag [#allocation7], %s517
        %s519 = sand.u32 %s62, 1
        %s520 = smul.addr %s519, 8
        %s521 = scalar_lea.vmem [#allocation6], %s520
        %p522 = pneg %p75
        %p523 = pneg %p72
        %s524 = sand.u32 %s33, 1
        %s525 = scalar_lea.sflag [#allocation10], %s524
        %s526 = sand.u32 %s90, 1
        %s527 = smul.addr %s526, 8
        %s528 = scalar_lea.vmem [#allocation9], %s527
        %p529 = pneg %p103
        %p530 = pneg %p100
        %s531 = sand.u32 %s33, 1
        %s532 = scalar_lea.sflag [#allocation10], %s531
        %s533 = sand.u32 %s118, 1
        %s534 = smul.addr %s533, 8
        %s535 = scalar_lea.vmem [#allocation11], %s534
        %p536 = pneg %p131
        %p537 = pneg %p128
        %p538 = pneg %p152
        %p539 = pneg %p149
        %p540 = pneg %p173
        %p541 = pneg %p170
        %p542 = pneg %p194
        %p543 = pneg %p191
        %p544 = pneg %p215
        %p545 = pneg %p212
        %p546 = pneg %p236
        %p547 = pneg %p233
        %p548 = pneg %p257
        %p549 = pneg %p254
        %p550 = pneg %p278
        %p551 = pneg %p275
        %p552 = pneg %p299
        %p553 = pneg %p296
        %p554 = pneg %p327
        %p555 = pneg %p324
        %s556 = sand.u32 %s314, 1
        %s557 = scalar_lea.sflag [#allocation8], %s556
        %s558 = sand.u32 %s314, 1
        %s559 = smul.addr %s558, 8
        %s560 = scalar_lea.vmem [#allocation18], %s559
        %p561 = scmp.eq.s32.totalorder %s40, 0
        // Predicated region
        $region93: #{tpu_custom_call.1} parent=63 // pred_check
          %p562 = pneg %p561
        $region94: #{tpu_custom_call.1} parent=63 // pred_check_branch
          %564 = sbr.rel (%p562) target = $region96
        $region95: #{tpu_custom_call.1} parent=63 // pred_region
          %vm565 = vcmask 7168
          %566 = vst.msk [vmem:[#allocation3] sm:$0xff] %vm565, -inf
          %567 = vst.msk [vmem:[#allocation3 + $0x8] sm:$0xff] %vm565, -inf
          %568 = vst.msk [vmem:[#allocation3 + $0x10] sm:$0xff] %vm565, -inf
          %569 = vst.msk [vmem:[#allocation3 + $0x18] sm:$0xff] %vm565, -inf
          %570 = vst.msk [vmem:[#allocation4] sm:$0xff] %vm565, 0.0
          %571 = vst.msk [vmem:[#allocation4 + $0x8] sm:$0xff] %vm565, 0.0
          %572 = vst.msk [vmem:[#allocation4 + $0x10] sm:$0xff] %vm565, 0.0
          %573 = vst.msk [vmem:[#allocation4 + $0x18] sm:$0xff] %vm565, 0.0
          %vm574 = vcmask 64512
          %575 = vst.msk [vmem:[#allocation5] sm:$0xff] %vm574, 0.0
          %576 = vst.msk [vmem:[#allocation5 + $0x8] sm:$0xff] %vm574, 0.0
          %577 = vst.msk [vmem:[#allocation5 + $0x10] sm:$0xff] %vm574, 0.0
          %578 = vst.msk [vmem:[#allocation5 + $0x18] sm:$0xff] %vm574, 0.0
          %v579 = vld [vmem:[%s478] sm:$0xff]
          %v580 = vld [vmem:[#allocation12] sm:$0xff]
          %v581 = vld [vmem:[#allocation12 + $0x8] sm:$0xff]
          %v582 = vld [vmem:[#allocation12 + $0x10] sm:$0xff]
          %v583 = vld [vmem:[#allocation12 + $0x18] sm:$0xff]
          %v584 = vld [vmem:[%s4] sm:$0x1]
          %v586 = vlaneseq
          %v587 = vshrl.u32 %v586, 7
          %v588 = vsub.s32 0, %v587
          %v589 = vrot.slane %v584, %v588
          %vm591 = vcmask 261120
          %v593 = vsel %vm591, %v579, 0
          %595 = vmatprep.subr.mxu0 0.0
          %596 = vmatpush1.msra.mxu0 0.0
          %597 = vmatprep.subr.mxu0 0.0
          %598 = vmatpush1.msra.mxu0 0.0
          %599 = vmatprep.subr.mxu0 0.0
          %600 = vmatpush1.msra.mxu0 0.0
          %601 = vmatprep.subr.mxu0 0.0
          %602 = vmatpush1.msra.mxu0 0.0
          %603 = vmatprep.subr.mxu0 0.0
          %604 = vmatpush1.msra.mxu0 0.0
          %605 = vmatprep.subr.mxu0 0.0
          %606 = vmatpush1.msra.mxu0 0.0
          %607 = vmatprep.subr.mxu0 0.0
          %608 = vmatpush1.msra.mxu0 0.0
          %609 = vmatprep.subr.mxu0 0.0
          %610 = vmatpush1.msra.mxu0 0.0
          %611 = vmatprep.subr.mxu0 0.0
          %612 = vmatpush1.msra.mxu0 0.0
          %613 = vmatprep.subr.mxu0 0.0
          %614 = vmatpush1.msra.mxu0 0.0
          %615 = vmatprep.subr.mxu0 0.0
          %616 = vmatpush1.msra.mxu0 0.0
          %617 = vmatprep.subr.mxu0 0.0
          %618 = vmatpush1.msra.mxu0 0.0
          %619 = vmatprep.subr.mxu0 0.0
          %620 = vmatpush1.msra.mxu0 %v583
          %621 = vmatprep.subr.mxu0 0.0
          %622 = vmatpush1.msra.mxu0 %v582
          %623 = vmatprep.subr.mxu0 0.0
          %624 = vmatpush1.msra.mxu0 %v581
          %625 = vmatprep.subr.mxu0 0.0
          %626 = vmatpush1.msra.mxu0 %v580
          %627 = vmatprep.subr.mxu0 0.0
          %628 = vmatpush2.msra.mxu0 0.0
          %629 = vmatprep.subr.mxu0 0.0
          %630 = vmatpush2.msra.mxu0 0.0
          %631 = vmatprep.subr.mxu0 0.0
          %632 = vmatpush2.msra.mxu0 0.0
          %633 = vmatprep.subr.mxu0 0.0
          %634 = vmatpush2.msra.mxu0 0.0
          %635 = vmatprep.subr.mxu0 0.0
          %636 = vmatpush2.msra.mxu0 0.0
          %637 = vmatprep.subr.mxu0 0.0
          %638 = vmatpush2.msra.mxu0 0.0
          %639 = vmatprep.subr.mxu0 0.0
          %640 = vmatpush2.msra.mxu0 0.0
          %641 = vmatprep.subr.mxu0 0.0
          %642 = vmatpush2.msra.mxu0 0.0
          %643 = vmatprep.subr.mxu0 0.0
          %644 = vmatpush2.msra.mxu0 0.0
          %645 = vmatprep.subr.mxu0 0.0
          %646 = vmatpush2.msra.mxu0 0.0
          %647 = vmatprep.subr.mxu0 0.0
          %648 = vmatpush2.msra.mxu0 0.0
          %649 = vmatprep.subr.mxu0 0.0
          %650 = vmatpush2.msra.mxu0 0.0
          %651 = vmatprep.subr.mxu0 0.0
          %652 = vmatpush2.msra.mxu0 0.0
          %653 = vmatprep.subr.mxu0 0.0
          %654 = vmatpush2.msra.mxu0 0.0
          %655 = vmatprep.subr.mxu0 0.0
          %656 = vmatpush2.msra.mxu0 0.0
          %657 = vmatprep.subr.mxu0 0.0
          %658 = vmatpush2.msra.mxu0 0.0
          %659 = vmatprep.mubr.f32.mxu0 0.0
          %660 = vmatmul.mubr.f32.gmra.mxu0 %v593
          %v661 = vpop.f32.mrf.mxu0
          %v662 = vadd.f32 %v589, %v661
          %v663 = vpop.f32.mrf.mxu0
          %664 = vdwg.mxu0
          %v665 = vmul.f32 %v662, 0.35355338
          %666 = vst.msk [vmem:[#allocation2] sm:$0xff] %vm574, %v665
          %668 = vrot.lane.b32.xlu0 %v665, 120
          %v669 = vpop.permute.xlu0 %668
          %s671 = scalar_lea.vmem [#allocation2], 8
          %672 = vst.msk [vmem:[%s671] sm:$0xff] %vm574, %v669
          %673 = vrot.lane.b32.xlu0 %v665, 112
          %v674 = vpop.permute.xlu0 %673
          %s676 = scalar_lea.vmem [#allocation2], 16
          %677 = vst.msk [vmem:[%s676] sm:$0xff] %vm574, %v674
          %678 = vrot.lane.b32.xlu0 %v665, 104
          %v679 = vpop.permute.xlu0 %678
          %s681 = scalar_lea.vmem [#allocation2], 24
          %682 = vst.msk [vmem:[%s681] sm:$0xff] %vm574, %v679
        $region96: #{tpu_custom_call.1} parent=63 // pred_fallthru
          _
        %v683 = vld [vmem:[%s487] sm:$0xff]
        %v684 = vld [vmem:[%s496] sm:$0xff]
        %v685 = vld [vmem:[#allocation14] sm:$0xff]
        %v686 = vld [vmem:[#allocation14 + $0x8] sm:$0xff]
        %v687 = vld [vmem:[#allocation14 + $0x10] sm:$0xff]
        %v688 = vld [vmem:[#allocation14 + $0x18] sm:$0xff]
        %v689 = vld [vmem:[%s6] sm:$0x1]
        %v691 = vlaneseq
        %v692 = vshrl.u32 %v691, 7
        %v693 = vsub.s32 0, %v692
        %v694 = vrot.slane %v689, %v693
        %vm696 = vcmask 261120
        %v698 = vsel %vm696, %v683, 0
        %700 = vmatprep.subr.mxu0 0.0
        %701 = vmatpush1.msra.mxu0 0.0
        %702 = vmatprep.subr.mxu0 0.0
        %703 = vmatpush1.msra.mxu0 0.0
        %704 = vmatprep.subr.mxu0 0.0
        %705 = vmatpush1.msra.mxu0 0.0
        %706 = vmatprep.subr.mxu0 0.0
        %707 = vmatpush1.msra.mxu0 0.0
        %708 = vmatprep.subr.mxu0 0.0
        %709 = vmatpush1.msra.mxu0 0.0
        %710 = vmatprep.subr.mxu0 0.0
        %711 = vmatpush1.msra.mxu0 0.0
        %712 = vmatprep.subr.mxu0 0.0
        %713 = vmatpush1.msra.mxu0 0.0
        %714 = vmatprep.subr.mxu0 0.0
        %715 = vmatpush1.msra.mxu0 0.0
        %716 = vmatprep.subr.mxu0 0.0
        %717 = vmatpush1.msra.mxu0 0.0
        %718 = vmatprep.subr.mxu0 0.0
        %719 = vmatpush1.msra.mxu0 0.0
        %720 = vmatprep.subr.mxu0 0.0
        %721 = vmatpush1.msra.mxu0 0.0
        %722 = vmatprep.subr.mxu0 0.0
        %723 = vmatpush1.msra.mxu0 0.0
        %724 = vmatprep.subr.mxu0 0.0
        %725 = vmatpush1.msra.mxu0 %v688
        %726 = vmatprep.subr.mxu0 0.0
        %727 = vmatpush1.msra.mxu0 %v687
        %728 = vmatprep.subr.mxu0 0.0
        %729 = vmatpush1.msra.mxu0 %v686
        %730 = vmatprep.subr.mxu0 0.0
        %731 = vmatpush1.msra.mxu0 %v685
        %732 = vmatprep.subr.mxu0 0.0
        %733 = vmatpush2.msra.mxu0 0.0
        %734 = vmatprep.subr.mxu0 0.0
        %735 = vmatpush2.msra.mxu0 0.0
        %736 = vmatprep.subr.mxu0 0.0
        %737 = vmatpush2.msra.mxu0 0.0
        %738 = vmatprep.subr.mxu0 0.0
        %739 = vmatpush2.msra.mxu0 0.0
        %740 = vmatprep.subr.mxu0 0.0
        %741 = vmatpush2.msra.mxu0 0.0
        %742 = vmatprep.subr.mxu0 0.0
        %743 = vmatpush2.msra.mxu0 0.0
        %744 = vmatprep.subr.mxu0 0.0
        %745 = vmatpush2.msra.mxu0 0.0
        %746 = vmatprep.subr.mxu0 0.0
        %747 = vmatpush2.msra.mxu0 0.0
        %748 = vmatprep.subr.mxu0 0.0
        %749 = vmatpush2.msra.mxu0 0.0
        %750 = vmatprep.subr.mxu0 0.0
        %751 = vmatpush2.msra.mxu0 0.0
        %752 = vmatprep.subr.mxu0 0.0
        %753 = vmatpush2.msra.mxu0 0.0
        %754 = vmatprep.subr.mxu0 0.0
        %755 = vmatpush2.msra.mxu0 0.0
        %756 = vmatprep.subr.mxu0 0.0
        %757 = vmatpush2.msra.mxu0 0.0
        %758 = vmatprep.subr.mxu0 0.0
        %759 = vmatpush2.msra.mxu0 0.0
        %760 = vmatprep.subr.mxu0 0.0
        %761 = vmatpush2.msra.mxu0 0.0
        %762 = vmatprep.subr.mxu0 0.0
        %763 = vmatpush2.msra.mxu0 0.0
        %764 = vmatprep.mubr.f32.mxu0 0.0
        %765 = vmatmul.mubr.f32.gmra.mxu0 %v698
        %v766 = vpop.f32.mrf.mxu0
        %v767 = vadd.f32 %v694, %v766
        %v768 = vpop.f32.mrf.mxu0
        %769 = vdwg.mxu0
        %v770 = vld [vmem:[#allocation15] sm:$0xff]
        %v771 = vld [vmem:[#allocation15 + $0x8] sm:$0xff]
        %v772 = vld [vmem:[#allocation15 + $0x10] sm:$0xff]
        %v773 = vld [vmem:[#allocation15 + $0x18] sm:$0xff]
        %v774 = vld [vmem:[%s8] sm:$0x1]
        %v776 = vlaneseq
        %v777 = vshrl.u32 %v776, 7
        %v778 = vsub.s32 0, %v777
        %v779 = vrot.slane %v774, %v778
        %v782 = vsel %vm696, %v684, 0
        %784 = vmatprep.subr.mxu0 0.0
        %785 = vmatpush1.msra.mxu0 0.0
        %786 = vmatprep.subr.mxu0 0.0
        %787 = vmatpush1.msra.mxu0 0.0
        %788 = vmatprep.subr.mxu0 0.0
        %789 = vmatpush1.msra.mxu0 0.0
        %790 = vmatprep.subr.mxu0 0.0
        %791 = vmatpush1.msra.mxu0 0.0
        %792 = vmatprep.subr.mxu0 0.0
        %793 = vmatpush1.msra.mxu0 0.0
        %794 = vmatprep.subr.mxu0 0.0
        %795 = vmatpush1.msra.mxu0 0.0
        %796 = vmatprep.subr.mxu0 0.0
        %797 = vmatpush1.msra.mxu0 0.0
        %798 = vmatprep.subr.mxu0 0.0
        %799 = vmatpush1.msra.mxu0 0.0
        %800 = vmatprep.subr.mxu0 0.0
        %801 = vmatpush1.msra.mxu0 0.0
        %802 = vmatprep.subr.mxu0 0.0
        %803 = vmatpush1.msra.mxu0 0.0
        %804 = vmatprep.subr.mxu0 0.0
        %805 = vmatpush1.msra.mxu0 0.0
        %806 = vmatprep.subr.mxu0 0.0
        %807 = vmatpush1.msra.mxu0 0.0
        %808 = vmatprep.subr.mxu0 0.0
        %809 = vmatpush1.msra.mxu0 %v773
        %810 = vmatprep.subr.mxu0 0.0
        %811 = vmatpush1.msra.mxu0 %v772
        %812 = vmatprep.subr.mxu0 0.0
        %813 = vmatpush1.msra.mxu0 %v771
        %814 = vmatprep.subr.mxu0 0.0
        %815 = vmatpush1.msra.mxu0 %v770
        %816 = vmatprep.subr.mxu0 0.0
        %817 = vmatpush2.msra.mxu0 0.0
        %818 = vmatprep.subr.mxu0 0.0
        %819 = vmatpush2.msra.mxu0 0.0
        %820 = vmatprep.subr.mxu0 0.0
        %821 = vmatpush2.msra.mxu0 0.0
        %822 = vmatprep.subr.mxu0 0.0
        %823 = vmatpush2.msra.mxu0 0.0
        %824 = vmatprep.subr.mxu0 0.0
        %825 = vmatpush2.msra.mxu0 0.0
        %826 = vmatprep.subr.mxu0 0.0
        %827 = vmatpush2.msra.mxu0 0.0
        %828 = vmatprep.subr.mxu0 0.0
        %829 = vmatpush2.msra.mxu0 0.0
        %830 = vmatprep.subr.mxu0 0.0
        %831 = vmatpush2.msra.mxu0 0.0
        %832 = vmatprep.subr.mxu0 0.0
        %833 = vmatpush2.msra.mxu0 0.0
        %834 = vmatprep.subr.mxu0 0.0
        %835 = vmatpush2.msra.mxu0 0.0
        %836 = vmatprep.subr.mxu0 0.0
        %837 = vmatpush2.msra.mxu0 0.0
        %838 = vmatprep.subr.mxu0 0.0
        %839 = vmatpush2.msra.mxu0 0.0
        %840 = vmatprep.subr.mxu0 0.0
        %841 = vmatpush2.msra.mxu0 0.0
        %842 = vmatprep.subr.mxu0 0.0
        %843 = vmatpush2.msra.mxu0 0.0
        %844 = vmatprep.subr.mxu0 0.0
        %845 = vmatpush2.msra.mxu0 0.0
        %846 = vmatprep.subr.mxu0 0.0
        %847 = vmatpush2.msra.mxu0 0.0
        %848 = vmatprep.mubr.f32.mxu0 0.0
        %849 = vmatmul.mubr.f32.gmra.mxu0 %v782
        %v850 = vpop.f32.mrf.mxu0
        %v851 = vadd.f32 %v779, %v850
        %v852 = vpop.f32.mrf.mxu0
        %853 = vdwg.mxu0
        %855 = vrot.lane.b32.xlu0 %v767, 120
        %v856 = vpop.permute.xlu0 %855
        %857 = vrot.lane.b32.xlu0 %v767, 112
        %v858 = vpop.permute.xlu0 %857
        %859 = vrot.lane.b32.xlu0 %v767, 104
        %v860 = vpop.permute.xlu0 %859
        %862 = vrot.lane.b32.xlu0 %v851, 120
        %v863 = vpop.permute.xlu0 %862
        %865 = vrot.lane.b32.xlu0 %v851, 112
        %v866 = vpop.permute.xlu0 %865
        %868 = vrot.lane.b32.xlu0 %v851, 104
        %v869 = vpop.permute.xlu0 %868
        %v871 = vld [vmem:[#allocation2] sm:$0xff]
        %v872 = vld [vmem:[#allocation2 + $0x8] sm:$0xff]
        %v873 = vld [vmem:[#allocation2 + $0x10] sm:$0xff]
        %v874 = vld [vmem:[#allocation2 + $0x18] sm:$0xff]
        %vm875 = vcmask 64512
        %v877 = vsel %vm875, %v871, 0
        %v879 = vsel %vm875, %v767, 0
        %881 = vmatprep.subr.mxu0 0.0
        %882 = vmatpush1.xpose.msra.mxu0 0.0
        %883 = vmatprep.subr.mxu0 0.0
        %884 = vmatpush1.xpose.msra.mxu0 0.0
        %885 = vmatprep.subr.mxu0 0.0
        %886 = vmatpush1.xpose.msra.mxu0 0.0
        %887 = vmatprep.subr.mxu0 0.0
        %888 = vmatpush1.xpose.msra.mxu0 0.0
        %889 = vmatprep.subr.mxu0 0.0
        %890 = vmatpush1.xpose.msra.mxu0 0.0
        %891 = vmatprep.subr.mxu0 0.0
        %892 = vmatpush1.xpose.msra.mxu0 0.0
        %893 = vmatprep.subr.mxu0 0.0
        %894 = vmatpush1.xpose.msra.mxu0 0.0
        %895 = vmatprep.subr.mxu0 0.0
        %896 = vmatpush1.xpose.msra.mxu0 0.0
        %897 = vmatprep.subr.mxu0 0.0
        %898 = vmatpush1.xpose.msra.mxu0 0.0
        %899 = vmatprep.subr.mxu0 0.0
        %900 = vmatpush1.xpose.msra.mxu0 0.0
        %901 = vmatprep.subr.mxu0 0.0
        %902 = vmatpush1.xpose.msra.mxu0 0.0
        %903 = vmatprep.subr.mxu0 0.0
        %904 = vmatpush1.xpose.msra.mxu0 0.0
        %905 = vmatprep.subr.mxu0 0.0
        %906 = vmatpush1.xpose.msra.mxu0 0.0
        %907 = vmatprep.subr.mxu0 0.0
        %908 = vmatpush1.xpose.msra.mxu0 0.0
        %909 = vmatprep.subr.mxu0 0.0
        %910 = vmatpush1.xpose.msra.mxu0 0.0
        %911 = vmatprep.subr.mxu0 0.0
        %912 = vmatpush1.xpose.msra.mxu0 %v879
        %913 = vmatprep.subr.mxu0 0.0
        %914 = vmatpush2.xpose.msra.mxu0 0.0
        %915 = vmatprep.subr.mxu0 0.0
        %916 = vmatpush2.xpose.msra.mxu0 0.0
        %917 = vmatprep.subr.mxu0 0.0
        %918 = vmatpush2.xpose.msra.mxu0 0.0
        %919 = vmatprep.subr.mxu0 0.0
        %920 = vmatpush2.xpose.msra.mxu0 0.0
        %921 = vmatprep.subr.mxu0 0.0
        %922 = vmatpush2.xpose.msra.mxu0 0.0
        %923 = vmatprep.subr.mxu0 0.0
        %924 = vmatpush2.xpose.msra.mxu0 0.0
        %925 = vmatprep.subr.mxu0 0.0
        %926 = vmatpush2.xpose.msra.mxu0 0.0
        %927 = vmatprep.subr.mxu0 0.0
        %928 = vmatpush2.xpose.msra.mxu0 0.0
        %929 = vmatprep.subr.mxu0 0.0
        %930 = vmatpush2.xpose.msra.mxu0 0.0
        %931 = vmatprep.subr.mxu0 0.0
        %932 = vmatpush2.xpose.msra.mxu0 0.0
        %933 = vmatprep.subr.mxu0 0.0
        %934 = vmatpush2.xpose.msra.mxu0 0.0
        %935 = vmatprep.subr.mxu0 0.0
        %936 = vmatpush2.xpose.msra.mxu0 0.0
        %937 = vmatprep.subr.mxu0 0.0
        %938 = vmatpush2.xpose.msra.mxu0 0.0
        %939 = vmatprep.subr.mxu0 0.0
        %940 = vmatpush2.xpose.msra.mxu0 0.0
        %941 = vmatprep.subr.mxu0 0.0
        %942 = vmatpush2.xpose.msra.mxu0 0.0
        %943 = vmatprep.subr.mxu0 0.0
        %944 = vmatpush2.xpose.msra.mxu0 0.0
        %945 = vmatprep.mubr.f32.mxu0 0.0
        %946 = vmatmul.mubr.f32.gmra.mxu0 %v877
        %v947 = vpop.f32.mrf.mxu0
        %v948 = vadd.f32 0.0, %v947
        %v949 = vpop.f32.mrf.mxu0
        %950 = vdwg.mxu0
        %v952 = vsel %vm875, %v872, 0
        %v954 = vsel %vm875, %v856, 0
        %956 = vmatprep.subr.mxu0 0.0
        %957 = vmatpush1.xpose.msra.mxu0 0.0
        %958 = vmatprep.subr.mxu0 0.0
        %959 = vmatpush1.xpose.msra.mxu0 0.0
        %960 = vmatprep.subr.mxu0 0.0
        %961 = vmatpush1.xpose.msra.mxu0 0.0
        %962 = vmatprep.subr.mxu0 0.0
        %963 = vmatpush1.xpose.msra.mxu0 0.0
        %964 = vmatprep.subr.mxu0 0.0
        %965 = vmatpush1.xpose.msra.mxu0 0.0
        %966 = vmatprep.subr.mxu0 0.0
        %967 = vmatpush1.xpose.msra.mxu0 0.0
        %968 = vmatprep.subr.mxu0 0.0
        %969 = vmatpush1.xpose.msra.mxu0 0.0
        %970 = vmatprep.subr.mxu0 0.0
        %971 = vmatpush1.xpose.msra.mxu0 0.0
        %972 = vmatprep.subr.mxu0 0.0
        %973 = vmatpush1.xpose.msra.mxu0 0.0
        %974 = vmatprep.subr.mxu0 0.0
        %975 = vmatpush1.xpose.msra.mxu0 0.0
        %976 = vmatprep.subr.mxu0 0.0
        %977 = vmatpush1.xpose.msra.mxu0 0.0
        %978 = vmatprep.subr.mxu0 0.0
        %979 = vmatpush1.xpose.msra.mxu0 0.0
        %980 = vmatprep.subr.mxu0 0.0
        %981 = vmatpush1.xpose.msra.mxu0 0.0
        %982 = vmatprep.subr.mxu0 0.0
        %983 = vmatpush1.xpose.msra.mxu0 0.0
        %984 = vmatprep.subr.mxu0 0.0
        %985 = vmatpush1.xpose.msra.mxu0 0.0
        %986 = vmatprep.subr.mxu0 0.0
        %987 = vmatpush1.xpose.msra.mxu0 %v954
        %988 = vmatprep.subr.mxu0 0.0
        %989 = vmatpush2.xpose.msra.mxu0 0.0
        %990 = vmatprep.subr.mxu0 0.0
        %991 = vmatpush2.xpose.msra.mxu0 0.0
        %992 = vmatprep.subr.mxu0 0.0
        %993 = vmatpush2.xpose.msra.mxu0 0.0
        %994 = vmatprep.subr.mxu0 0.0
        %995 = vmatpush2.xpose.msra.mxu0 0.0
        %996 = vmatprep.subr.mxu0 0.0
        %997 = vmatpush2.xpose.msra.mxu0 0.0
        %998 = vmatprep.subr.mxu0 0.0
        %999 = vmatpush2.xpose.msra.mxu0 0.0
        %1000 = vmatprep.subr.mxu0 0.0
        %1001 = vmatpush2.xpose.msra.mxu0 0.0
        %1002 = vmatprep.subr.mxu0 0.0
        %1003 = vmatpush2.xpose.msra.mxu0 0.0
        %1004 = vmatprep.subr.mxu0 0.0
        %1005 = vmatpush2.xpose.msra.mxu0 0.0
        %1006 = vmatprep.subr.mxu0 0.0
        %1007 = vmatpush2.xpose.msra.mxu0 0.0
        %1008 = vmatprep.subr.mxu0 0.0
        %1009 = vmatpush2.xpose.msra.mxu0 0.0
        %1010 = vmatprep.subr.mxu0 0.0
        %1011 = vmatpush2.xpose.msra.mxu0 0.0
        %1012 = vmatprep.subr.mxu0 0.0
        %1013 = vmatpush2.xpose.msra.mxu0 0.0
        %1014 = vmatprep.subr.mxu0 0.0
        %1015 = vmatpush2.xpose.msra.mxu0 0.0
        %1016 = vmatprep.subr.mxu0 0.0
        %1017 = vmatpush2.xpose.msra.mxu0 0.0
        %1018 = vmatprep.subr.mxu0 0.0
        %1019 = vmatpush2.xpose.msra.mxu0 0.0
        %1020 = vmatprep.mubr.f32.mxu0 0.0
        %1021 = vmatmul.mubr.f32.gmra.mxu0 %v952
        %v1022 = vpop.f32.mrf.mxu0
        %v1023 = vadd.f32 0.0, %v1022
        %v1024 = vpop.f32.mrf.mxu0
        %1025 = vdwg.mxu0
        %v1027 = vsel %vm875, %v873, 0
        %v1029 = vsel %vm875, %v858, 0
        %1031 = vmatprep.subr.mxu0 0.0
        %1032 = vmatpush1.xpose.msra.mxu0 0.0
        %1033 = vmatprep.subr.mxu0 0.0
        %1034 = vmatpush1.xpose.msra.mxu0 0.0
        %1035 = vmatprep.subr.mxu0 0.0
        %1036 = vmatpush1.xpose.msra.mxu0 0.0
        %1037 = vmatprep.subr.mxu0 0.0
        %1038 = vmatpush1.xpose.msra.mxu0 0.0
        %1039 = vmatprep.subr.mxu0 0.0
        %1040 = vmatpush1.xpose.msra.mxu0 0.0
        %1041 = vmatprep.subr.mxu0 0.0
        %1042 = vmatpush1.xpose.msra.mxu0 0.0
        %1043 = vmatprep.subr.mxu0 0.0
        %1044 = vmatpush1.xpose.msra.mxu0 0.0
        %1045 = vmatprep.subr.mxu0 0.0
        %1046 = vmatpush1.xpose.msra.mxu0 0.0
        %1047 = vmatprep.subr.mxu0 0.0
        %1048 = vmatpush1.xpose.msra.mxu0 0.0
        %1049 = vmatprep.subr.mxu0 0.0
        %1050 = vmatpush1.xpose.msra.mxu0 0.0
        %1051 = vmatprep.subr.mxu0 0.0
        %1052 = vmatpush1.xpose.msra.mxu0 0.0
        %1053 = vmatprep.subr.mxu0 0.0
        %1054 = vmatpush1.xpose.msra.mxu0 0.0
        %1055 = vmatprep.subr.mxu0 0.0
        %1056 = vmatpush1.xpose.msra.mxu0 0.0
        %1057 = vmatprep.subr.mxu0 0.0
        %1058 = vmatpush1.xpose.msra.mxu0 0.0
        %1059 = vmatprep.subr.mxu0 0.0
        %1060 = vmatpush1.xpose.msra.mxu0 0.0
        %1061 = vmatprep.subr.mxu0 0.0
        %1062 = vmatpush1.xpose.msra.mxu0 %v1029
        %1063 = vmatprep.subr.mxu0 0.0
        %1064 = vmatpush2.xpose.msra.mxu0 0.0
        %1065 = vmatprep.subr.mxu0 0.0
        %1066 = vmatpush2.xpose.msra.mxu0 0.0
        %1067 = vmatprep.subr.mxu0 0.0
        %1068 = vmatpush2.xpose.msra.mxu0 0.0
        %1069 = vmatprep.subr.mxu0 0.0
        %1070 = vmatpush2.xpose.msra.mxu0 0.0
        %1071 = vmatprep.subr.mxu0 0.0
        %1072 = vmatpush2.xpose.msra.mxu0 0.0
        %1073 = vmatprep.subr.mxu0 0.0
        %1074 = vmatpush2.xpose.msra.mxu0 0.0
        %1075 = vmatprep.subr.mxu0 0.0
        %1076 = vmatpush2.xpose.msra.mxu0 0.0
        %1077 = vmatprep.subr.mxu0 0.0
        %1078 = vmatpush2.xpose.msra.mxu0 0.0
        %1079 = vmatprep.subr.mxu0 0.0
        %1080 = vmatpush2.xpose.msra.mxu0 0.0
        %1081 = vmatprep.subr.mxu0 0.0
        %1082 = vmatpush2.xpose.msra.mxu0 0.0
        %1083 = vmatprep.subr.mxu0 0.0
        %1084 = vmatpush2.xpose.msra.mxu0 0.0
        %1085 = vmatprep.subr.mxu0 0.0
        %1086 = vmatpush2.xpose.msra.mxu0 0.0
        %1087 = vmatprep.subr.mxu0 0.0
        %1088 = vmatpush2.xpose.msra.mxu0 0.0
        %1089 = vmatprep.subr.mxu0 0.0
        %1090 = vmatpush2.xpose.msra.mxu0 0.0
        %1091 = vmatprep.subr.mxu0 0.0
        %1092 = vmatpush2.xpose.msra.mxu0 0.0
        %1093 = vmatprep.subr.mxu0 0.0
        %1094 = vmatpush2.xpose.msra.mxu0 0.0
        %1095 = vmatprep.mubr.f32.mxu0 0.0
        %1096 = vmatmul.mubr.f32.gmra.mxu0 %v1027
        %v1097 = vpop.f32.mrf.mxu0
        %v1098 = vadd.f32 0.0, %v1097
        %v1099 = vpop.f32.mrf.mxu0
        %1100 = vdwg.mxu0
        %v1102 = vsel %vm875, %v874, 0
        %v1104 = vsel %vm875, %v860, 0
        %1106 = vmatprep.subr.mxu0 0.0
        %1107 = vmatpush1.xpose.msra.mxu0 0.0
        %1108 = vmatprep.subr.mxu0 0.0
        %1109 = vmatpush1.xpose.msra.mxu0 0.0
        %1110 = vmatprep.subr.mxu0 0.0
        %1111 = vmatpush1.xpose.msra.mxu0 0.0
        %1112 = vmatprep.subr.mxu0 0.0
        %1113 = vmatpush1.xpose.msra.mxu0 0.0
        %1114 = vmatprep.subr.mxu0 0.0
        %1115 = vmatpush1.xpose.msra.mxu0 0.0
        %1116 = vmatprep.subr.mxu0 0.0
        %1117 = vmatpush1.xpose.msra.mxu0 0.0
        %1118 = vmatprep.subr.mxu0 0.0
        %1119 = vmatpush1.xpose.msra.mxu0 0.0
        %1120 = vmatprep.subr.mxu0 0.0
        %1121 = vmatpush1.xpose.msra.mxu0 0.0
        %1122 = vmatprep.subr.mxu0 0.0
        %1123 = vmatpush1.xpose.msra.mxu0 0.0
        %1124 = vmatprep.subr.mxu0 0.0
        %1125 = vmatpush1.xpose.msra.mxu0 0.0
        %1126 = vmatprep.subr.mxu0 0.0
        %1127 = vmatpush1.xpose.msra.mxu0 0.0
        %1128 = vmatprep.subr.mxu0 0.0
        %1129 = vmatpush1.xpose.msra.mxu0 0.0
        %1130 = vmatprep.subr.mxu0 0.0
        %1131 = vmatpush1.xpose.msra.mxu0 0.0
        %1132 = vmatprep.subr.mxu0 0.0
        %1133 = vmatpush1.xpose.msra.mxu0 0.0
        %1134 = vmatprep.subr.mxu0 0.0
        %1135 = vmatpush1.xpose.msra.mxu0 0.0
        %1136 = vmatprep.subr.mxu0 0.0
        %1137 = vmatpush1.xpose.msra.mxu0 %v1104
        %1138 = vmatprep.subr.mxu0 0.0
        %1139 = vmatpush2.xpose.msra.mxu0 0.0
        %1140 = vmatprep.subr.mxu0 0.0
        %1141 = vmatpush2.xpose.msra.mxu0 0.0
        %1142 = vmatprep.subr.mxu0 0.0
        %1143 = vmatpush2.xpose.msra.mxu0 0.0
        %1144 = vmatprep.subr.mxu0 0.0
        %1145 = vmatpush2.xpose.msra.mxu0 0.0
        %1146 = vmatprep.subr.mxu0 0.0
        %1147 = vmatpush2.xpose.msra.mxu0 0.0
        %1148 = vmatprep.subr.mxu0 0.0
        %1149 = vmatpush2.xpose.msra.mxu0 0.0
        %1150 = vmatprep.subr.mxu0 0.0
        %1151 = vmatpush2.xpose.msra.mxu0 0.0
        %1152 = vmatprep.subr.mxu0 0.0
        %1153 = vmatpush2.xpose.msra.mxu0 0.0
        %1154 = vmatprep.subr.mxu0 0.0
        %1155 = vmatpush2.xpose.msra.mxu0 0.0
        %1156 = vmatprep.subr.mxu0 0.0
        %1157 = vmatpush2.xpose.msra.mxu0 0.0
        %1158 = vmatprep.subr.mxu0 0.0
        %1159 = vmatpush2.xpose.msra.mxu0 0.0
        %1160 = vmatprep.subr.mxu0 0.0
        %1161 = vmatpush2.xpose.msra.mxu0 0.0
        %1162 = vmatprep.subr.mxu0 0.0
        %1163 = vmatpush2.xpose.msra.mxu0 0.0
        %1164 = vmatprep.subr.mxu0 0.0
        %1165 = vmatpush2.xpose.msra.mxu0 0.0
        %1166 = vmatprep.subr.mxu0 0.0
        %1167 = vmatpush2.xpose.msra.mxu0 0.0
        %1168 = vmatprep.subr.mxu0 0.0
        %1169 = vmatpush2.xpose.msra.mxu0 0.0
        %1170 = vmatprep.mubr.f32.mxu0 0.0
        %1171 = vmatmul.mubr.f32.gmra.mxu0 %v1102
        %v1172 = vpop.f32.mrf.mxu0
        %v1173 = vadd.f32 0.0, %v1172
        %v1174 = vpop.f32.mrf.mxu0
        %1175 = vdwg.mxu0
        %v1176 = vld [vmem:[#allocation3] sm:$0xff]
        %v1177 = vld [vmem:[#allocation3 + $0x8] sm:$0xff]
        %v1178 = vld [vmem:[#allocation3 + $0x10] sm:$0xff]
        %v1179 = vld [vmem:[#allocation3 + $0x18] sm:$0xff]
        %v1180 = vsel %vm875, %v948, -inf
        %1181 = vmax.xlane.f32.xlu0 %v1180
        %v1182 = vpop.xlane.xlu0 %1181
        %v1183 = vsel %vm875, %v1023, -inf
        %1184 = vmax.xlane.f32.xlu0 %v1183
        %v1185 = vpop.xlane.xlu0 %1184
        %v1186 = vsel %vm875, %v1098, -inf
        %1187 = vmax.xlane.f32.xlu0 %v1186
        %v1188 = vpop.xlane.xlu0 %1187
        %v1189 = vsel %vm875, %v1173, -inf
        %1190 = vmax.xlane.f32.xlu0 %v1189
        %v1191 = vpop.xlane.xlu0 %1190
        %v1192 = vmax.f32 %v1176, %v1182
        %v1193 = vmax.f32 %v1177, %v1185
        %v1194 = vmax.f32 %v1178, %v1188
        %v1195 = vmax.f32 %v1179, %v1191
        %v1196 = vsub.f32 %v1176, %v1192
        %v1197 = vsub.f32 %v1177, %v1193
        %v1198 = vsub.f32 %v1178, %v1194
        %v1199 = vsub.f32 %v1179, %v1195
        %v1200 = vmul.f32 %v1196, 1.442695
        %v1201 = vpow.pop %v1200
        %v1202 = vmul.f32 %v1197, 1.442695
        %v1203 = vpow.pop %v1202
        %v1204 = vmul.f32 %v1198, 1.442695
        %v1205 = vpow.pop %v1204
        %v1206 = vmul.f32 %v1199, 1.442695
        %v1207 = vpow.pop %v1206
        %1209 = vset.pattern.permute.xlu0 0
        %1210 = vperm.xlu0 %1209, %v1192
        %v1211 = vpop.permute.xlu0 %1210
        %1214 = vset.pattern.permute.xlu0 0
        %1215 = vperm.xlu0 %1214, %v1193
        %v1216 = vpop.permute.xlu0 %1215
        %1219 = vset.pattern.permute.xlu0 0
        %1220 = vperm.xlu0 %1219, %v1194
        %v1221 = vpop.permute.xlu0 %1220
        %1224 = vset.pattern.permute.xlu0 0
        %1225 = vperm.xlu0 %1224, %v1195
        %v1226 = vpop.permute.xlu0 %1225
        %v1228 = vsub.f32 %v948, %v1211
        %v1229 = vsub.f32 %v1023, %v1216
        %v1230 = vsub.f32 %v1098, %v1221
        %v1231 = vsub.f32 %v1173, %v1226
        %v1232 = vmul.f32 %v1228, 1.442695
        %v1233 = vpow.pop %v1232
        %v1234 = vmul.f32 %v1229, 1.442695
        %v1235 = vpow.pop %v1234
        %v1236 = vmul.f32 %v1230, 1.442695
        %v1237 = vpow.pop %v1236
        %v1238 = vmul.f32 %v1231, 1.442695
        %v1239 = vpow.pop %v1238
        %v1240 = vld [vmem:[#allocation4] sm:$0xff]
        %v1241 = vld [vmem:[#allocation4 + $0x8] sm:$0xff]
        %v1242 = vld [vmem:[#allocation4 + $0x10] sm:$0xff]
        %v1243 = vld [vmem:[#allocation4 + $0x18] sm:$0xff]
        %v1244 = vmul.f32 %v1201, %v1240
        %v1245 = vmul.f32 %v1203, %v1241
        %v1246 = vmul.f32 %v1205, %v1242
        %v1247 = vmul.f32 %v1207, %v1243
        %v1248 = vsel %vm875, %v1233, 0.0
        %1249 = vadd.xlane.f32.xlu0 %v1248
        %v1250 = vpop.xlane.xlu0 %1249
        %v1251 = vsel %vm875, %v1235, 0.0
        %1252 = vadd.xlane.f32.xlu0 %v1251
        %v1253 = vpop.xlane.xlu0 %1252
        %v1254 = vsel %vm875, %v1237, 0.0
        %1255 = vadd.xlane.f32.xlu0 %v1254
        %v1256 = vpop.xlane.xlu0 %1255
        %v1257 = vsel %vm875, %v1239, 0.0
        %1258 = vadd.xlane.f32.xlu0 %v1257
        %v1259 = vpop.xlane.xlu0 %1258
        %v1260 = vadd.f32 %v1244, %v1250
        %v1261 = vadd.f32 %v1245, %v1253
        %v1262 = vadd.f32 %v1246, %v1256
        %v1263 = vadd.f32 %v1247, %v1259
        %vm1264 = vcmask 7168
        %1265 = vst.msk [vmem:[#allocation4] sm:$0xff] %vm1264, %v1260
        %1266 = vst.msk [vmem:[#allocation4 + $0x8] sm:$0xff] %vm1264, %v1261
        %1267 = vst.msk [vmem:[#allocation4 + $0x10] sm:$0xff] %vm1264, %v1262
        %1268 = vst.msk [vmem:[#allocation4 + $0x18] sm:$0xff] %vm1264, %v1263
        %v1269 = vld [vmem:[#allocation5] sm:$0xff]
        %v1270 = vld [vmem:[#allocation5 + $0x8] sm:$0xff]
        %v1271 = vld [vmem:[#allocation5 + $0x10] sm:$0xff]
        %v1272 = vld [vmem:[#allocation5 + $0x18] sm:$0xff]
        %1274 = vset.pattern.permute.xlu0 0
        %1275 = vperm.xlu0 %1274, %v1201
        %v1276 = vpop.permute.xlu0 %1275
        %1279 = vset.pattern.permute.xlu0 0
        %1280 = vperm.xlu0 %1279, %v1203
        %v1281 = vpop.permute.xlu0 %1280
        %1284 = vset.pattern.permute.xlu0 0
        %1285 = vperm.xlu0 %1284, %v1205
        %v1286 = vpop.permute.xlu0 %1285
        %1289 = vset.pattern.permute.xlu0 0
        %1290 = vperm.xlu0 %1289, %v1207
        %v1291 = vpop.permute.xlu0 %1290
        %v1293 = vmul.f32 %v1276, %v1269
        %v1294 = vmul.f32 %v1281, %v1270
        %v1295 = vmul.f32 %v1286, %v1271
        %v1296 = vmul.f32 %v1291, %v1272
        %v1298 = vsel %vm875, %v1233, 0
        %1300 = vmatprep.subr.mxu0 0.0
        %1301 = vmatpush1.msra.mxu0 0.0
        %1302 = vmatprep.subr.mxu0 0.0
        %1303 = vmatpush1.msra.mxu0 0.0
        %1304 = vmatprep.subr.mxu0 0.0
        %1305 = vmatpush1.msra.mxu0 0.0
        %1306 = vmatprep.subr.mxu0 0.0
        %1307 = vmatpush1.msra.mxu0 0.0
        %1308 = vmatprep.subr.mxu0 0.0
        %1309 = vmatpush1.msra.mxu0 0.0
        %1310 = vmatprep.subr.mxu0 0.0
        %1311 = vmatpush1.msra.mxu0 0.0
        %1312 = vmatprep.subr.mxu0 0.0
        %1313 = vmatpush1.msra.mxu0 0.0
        %1314 = vmatprep.subr.mxu0 0.0
        %1315 = vmatpush1.msra.mxu0 0.0
        %1316 = vmatprep.subr.mxu0 0.0
        %1317 = vmatpush1.msra.mxu0 0.0
        %1318 = vmatprep.subr.mxu0 0.0
        %1319 = vmatpush1.msra.mxu0 0.0
        %1320 = vmatprep.subr.mxu0 0.0
        %1321 = vmatpush1.msra.mxu0 0.0
        %1322 = vmatprep.subr.mxu0 0.0
        %1323 = vmatpush1.msra.mxu0 0.0
        %1324 = vmatprep.subr.mxu0 0.0
        %1325 = vmatpush1.msra.mxu0 0.0
        %1326 = vmatprep.subr.mxu0 0.0
        %1327 = vmatpush1.msra.mxu0 0.0
        %1328 = vmatprep.subr.mxu0 0.0
        %1329 = vmatpush1.msra.mxu0 0.0
        %1330 = vmatprep.subr.mxu0 0.0
        %1331 = vmatpush1.msra.mxu0 %v851
        %1332 = vmatprep.subr.mxu0 0.0
        %1333 = vmatpush2.msra.mxu0 0.0
        %1334 = vmatprep.subr.mxu0 0.0
        %1335 = vmatpush2.msra.mxu0 0.0
        %1336 = vmatprep.subr.mxu0 0.0
        %1337 = vmatpush2.msra.mxu0 0.0
        %1338 = vmatprep.subr.mxu0 0.0
        %1339 = vmatpush2.msra.mxu0 0.0
        %1340 = vmatprep.subr.mxu0 0.0
        %1341 = vmatpush2.msra.mxu0 0.0
        %1342 = vmatprep.subr.mxu0 0.0
        %1343 = vmatpush2.msra.mxu0 0.0
        %1344 = vmatprep.subr.mxu0 0.0
        %1345 = vmatpush2.msra.mxu0 0.0
        %1346 = vmatprep.subr.mxu0 0.0
        %1347 = vmatpush2.msra.mxu0 0.0
        %1348 = vmatprep.subr.mxu0 0.0
        %1349 = vmatpush2.msra.mxu0 0.0
        %1350 = vmatprep.subr.mxu0 0.0
        %1351 = vmatpush2.msra.mxu0 0.0
        %1352 = vmatprep.subr.mxu0 0.0
        %1353 = vmatpush2.msra.mxu0 0.0
        %1354 = vmatprep.subr.mxu0 0.0
        %1355 = vmatpush2.msra.mxu0 0.0
        %1356 = vmatprep.subr.mxu0 0.0
        %1357 = vmatpush2.msra.mxu0 0.0
        %1358 = vmatprep.subr.mxu0 0.0
        %1359 = vmatpush2.msra.mxu0 0.0
        %1360 = vmatprep.subr.mxu0 0.0
        %1361 = vmatpush2.msra.mxu0 0.0
        %1362 = vmatprep.subr.mxu0 0.0
        %1363 = vmatpush2.msra.mxu0 0.0
        %1364 = vmatprep.mubr.f32.mxu0 0.0
        %1365 = vmatmul.mubr.f32.gmra.mxu0 %v1298
        %v1366 = vpop.f32.mrf.mxu0
        %v1367 = vadd.f32 0.0, %v1366
        %v1368 = vpop.f32.mrf.mxu0
        %1369 = vdwg.mxu0
        %v1371 = vsel %vm875, %v1235, 0
        %1373 = vmatprep.subr.mxu0 0.0
        %1374 = vmatpush1.msra.mxu0 0.0
        %1375 = vmatprep.subr.mxu0 0.0
        %1376 = vmatpush1.msra.mxu0 0.0
        %1377 = vmatprep.subr.mxu0 0.0
        %1378 = vmatpush1.msra.mxu0 0.0
        %1379 = vmatprep.subr.mxu0 0.0
        %1380 = vmatpush1.msra.mxu0 0.0
        %1381 = vmatprep.subr.mxu0 0.0
        %1382 = vmatpush1.msra.mxu0 0.0
        %1383 = vmatprep.subr.mxu0 0.0
        %1384 = vmatpush1.msra.mxu0 0.0
        %1385 = vmatprep.subr.mxu0 0.0
        %1386 = vmatpush1.msra.mxu0 0.0
        %1387 = vmatprep.subr.mxu0 0.0
        %1388 = vmatpush1.msra.mxu0 0.0
        %1389 = vmatprep.subr.mxu0 0.0
        %1390 = vmatpush1.msra.mxu0 0.0
        %1391 = vmatprep.subr.mxu0 0.0
        %1392 = vmatpush1.msra.mxu0 0.0
        %1393 = vmatprep.subr.mxu0 0.0
        %1394 = vmatpush1.msra.mxu0 0.0
        %1395 = vmatprep.subr.mxu0 0.0
        %1396 = vmatpush1.msra.mxu0 0.0
        %1397 = vmatprep.subr.mxu0 0.0
        %1398 = vmatpush1.msra.mxu0 0.0
        %1399 = vmatprep.subr.mxu0 0.0
        %1400 = vmatpush1.msra.mxu0 0.0
        %1401 = vmatprep.subr.mxu0 0.0
        %1402 = vmatpush1.msra.mxu0 0.0
        %1403 = vmatprep.subr.mxu0 0.0
        %1404 = vmatpush1.msra.mxu0 %v863
        %1405 = vmatprep.subr.mxu0 0.0
        %1406 = vmatpush2.msra.mxu0 0.0
        %1407 = vmatprep.subr.mxu0 0.0
        %1408 = vmatpush2.msra.mxu0 0.0
        %1409 = vmatprep.subr.mxu0 0.0
        %1410 = vmatpush2.msra.mxu0 0.0
        %1411 = vmatprep.subr.mxu0 0.0
        %1412 = vmatpush2.msra.mxu0 0.0
        %1413 = vmatprep.subr.mxu0 0.0
        %1414 = vmatpush2.msra.mxu0 0.0
        %1415 = vmatprep.subr.mxu0 0.0
        %1416 = vmatpush2.msra.mxu0 0.0
        %1417 = vmatprep.subr.mxu0 0.0
        %1418 = vmatpush2.msra.mxu0 0.0
        %1419 = vmatprep.subr.mxu0 0.0
        %1420 = vmatpush2.msra.mxu0 0.0
        %1421 = vmatprep.subr.mxu0 0.0
        %1422 = vmatpush2.msra.mxu0 0.0
        %1423 = vmatprep.subr.mxu0 0.0
        %1424 = vmatpush2.msra.mxu0 0.0
        %1425 = vmatprep.subr.mxu0 0.0
        %1426 = vmatpush2.msra.mxu0 0.0
        %1427 = vmatprep.subr.mxu0 0.0
        %1428 = vmatpush2.msra.mxu0 0.0
        %1429 = vmatprep.subr.mxu0 0.0
        %1430 = vmatpush2.msra.mxu0 0.0
        %1431 = vmatprep.subr.mxu0 0.0
        %1432 = vmatpush2.msra.mxu0 0.0
        %1433 = vmatprep.subr.mxu0 0.0
        %1434 = vmatpush2.msra.mxu0 0.0
        %1435 = vmatprep.subr.mxu0 0.0
        %1436 = vmatpush2.msra.mxu0 0.0
        %1437 = vmatprep.mubr.f32.mxu0 0.0
        %1438 = vmatmul.mubr.f32.gmra.mxu0 %v1371
        %v1439 = vpop.f32.mrf.mxu0
        %v1440 = vadd.f32 0.0, %v1439
        %v1441 = vpop.f32.mrf.mxu0
        %1442 = vdwg.mxu0
        %v1444 = vsel %vm875, %v1237, 0
        %1446 = vmatprep.subr.mxu0 0.0
        %1447 = vmatpush1.msra.mxu0 0.0
        %1448 = vmatprep.subr.mxu0 0.0
        %1449 = vmatpush1.msra.mxu0 0.0
        %1450 = vmatprep.subr.mxu0 0.0
        %1451 = vmatpush1.msra.mxu0 0.0
        %1452 = vmatprep.subr.mxu0 0.0
        %1453 = vmatpush1.msra.mxu0 0.0
        %1454 = vmatprep.subr.mxu0 0.0
        %1455 = vmatpush1.msra.mxu0 0.0
        %1456 = vmatprep.subr.mxu0 0.0
        %1457 = vmatpush1.msra.mxu0 0.0
        %1458 = vmatprep.subr.mxu0 0.0
        %1459 = vmatpush1.msra.mxu0 0.0
        %1460 = vmatprep.subr.mxu0 0.0
        %1461 = vmatpush1.msra.mxu0 0.0
        %1462 = vmatprep.subr.mxu0 0.0
        %1463 = vmatpush1.msra.mxu0 0.0
        %1464 = vmatprep.subr.mxu0 0.0
        %1465 = vmatpush1.msra.mxu0 0.0
        %1466 = vmatprep.subr.mxu0 0.0
        %1467 = vmatpush1.msra.mxu0 0.0
        %1468 = vmatprep.subr.mxu0 0.0
        %1469 = vmatpush1.msra.mxu0 0.0
        %1470 = vmatprep.subr.mxu0 0.0
        %1471 = vmatpush1.msra.mxu0 0.0
        %1472 = vmatprep.subr.mxu0 0.0
        %1473 = vmatpush1.msra.mxu0 0.0
        %1474 = vmatprep.subr.mxu0 0.0
        %1475 = vmatpush1.msra.mxu0 0.0
        %1476 = vmatprep.subr.mxu0 0.0
        %1477 = vmatpush1.msra.mxu0 %v866
        %1478 = vmatprep.subr.mxu0 0.0
        %1479 = vmatpush2.msra.mxu0 0.0
        %1480 = vmatprep.subr.mxu0 0.0
        %1481 = vmatpush2.msra.mxu0 0.0
        %1482 = vmatprep.subr.mxu0 0.0
        %1483 = vmatpush2.msra.mxu0 0.0
        %1484 = vmatprep.subr.mxu0 0.0
        %1485 = vmatpush2.msra.mxu0 0.0
        %1486 = vmatprep.subr.mxu0 0.0
        %1487 = vmatpush2.msra.mxu0 0.0
        %1488 = vmatprep.subr.mxu0 0.0
        %1489 = vmatpush2.msra.mxu0 0.0
        %1490 = vmatprep.subr.mxu0 0.0
        %1491 = vmatpush2.msra.mxu0 0.0
        %1492 = vmatprep.subr.mxu0 0.0
        %1493 = vmatpush2.msra.mxu0 0.0
        %1494 = vmatprep.subr.mxu0 0.0
        %1495 = vmatpush2.msra.mxu0 0.0
        %1496 = vmatprep.subr.mxu0 0.0
        %1497 = vmatpush2.msra.mxu0 0.0
        %1498 = vmatprep.subr.mxu0 0.0
        %1499 = vmatpush2.msra.mxu0 0.0
        %1500 = vmatprep.subr.mxu0 0.0
        %1501 = vmatpush2.msra.mxu0 0.0
        %1502 = vmatprep.subr.mxu0 0.0
        %1503 = vmatpush2.msra.mxu0 0.0
        %1504 = vmatprep.subr.mxu0 0.0
        %1505 = vmatpush2.msra.mxu0 0.0
        %1506 = vmatprep.subr.mxu0 0.0
        %1507 = vmatpush2.msra.mxu0 0.0
        %1508 = vmatprep.subr.mxu0 0.0
        %1509 = vmatpush2.msra.mxu0 0.0
        %1510 = vmatprep.mubr.f32.mxu0 0.0
        %1511 = vmatmul.mubr.f32.gmra.mxu0 %v1444
        %v1512 = vpop.f32.mrf.mxu0
        %v1513 = vadd.f32 0.0, %v1512
        %v1514 = vpop.f32.mrf.mxu0
        %1515 = vdwg.mxu0
        %v1517 = vsel %vm875, %v1239, 0
        %1519 = vmatprep.subr.mxu0 0.0
        %1520 = vmatpush1.msra.mxu0 0.0
        %1521 = vmatprep.subr.mxu0 0.0
        %1522 = vmatpush1.msra.mxu0 0.0
        %1523 = vmatprep.subr.mxu0 0.0
        %1524 = vmatpush1.msra.mxu0 0.0
        %1525 = vmatprep.subr.mxu0 0.0
        %1526 = vmatpush1.msra.mxu0 0.0
        %1527 = vmatprep.subr.mxu0 0.0
        %1528 = vmatpush1.msra.mxu0 0.0
        %1529 = vmatprep.subr.mxu0 0.0
        %1530 = vmatpush1.msra.mxu0 0.0
        %1531 = vmatprep.subr.mxu0 0.0
        %1532 = vmatpush1.msra.mxu0 0.0
        %1533 = vmatprep.subr.mxu0 0.0
        %1534 = vmatpush1.msra.mxu0 0.0
        %1535 = vmatprep.subr.mxu0 0.0
        %1536 = vmatpush1.msra.mxu0 0.0
        %1537 = vmatprep.subr.mxu0 0.0
        %1538 = vmatpush1.msra.mxu0 0.0
        %1539 = vmatprep.subr.mxu0 0.0
        %1540 = vmatpush1.msra.mxu0 0.0
        %1541 = vmatprep.subr.mxu0 0.0
        %1542 = vmatpush1.msra.mxu0 0.0
        %1543 = vmatprep.subr.mxu0 0.0
        %1544 = vmatpush1.msra.mxu0 0.0
        %1545 = vmatprep.subr.mxu0 0.0
        %1546 = vmatpush1.msra.mxu0 0.0
        %1547 = vmatprep.subr.mxu0 0.0
        %1548 = vmatpush1.msra.mxu0 0.0
        %1549 = vmatprep.subr.mxu0 0.0
        %1550 = vmatpush1.msra.mxu0 %v869
        %1551 = vmatprep.subr.mxu0 0.0
        %1552 = vmatpush2.msra.mxu0 0.0
        %1553 = vmatprep.subr.mxu0 0.0
        %1554 = vmatpush2.msra.mxu0 0.0
        %1555 = vmatprep.subr.mxu0 0.0
        %1556 = vmatpush2.msra.mxu0 0.0
        %1557 = vmatprep.subr.mxu0 0.0
        %1558 = vmatpush2.msra.mxu0 0.0
        %1559 = vmatprep.subr.mxu0 0.0
        %1560 = vmatpush2.msra.mxu0 0.0
        %1561 = vmatprep.subr.mxu0 0.0
        %1562 = vmatpush2.msra.mxu0 0.0
        %1563 = vmatprep.subr.mxu0 0.0
        %1564 = vmatpush2.msra.mxu0 0.0
        %1565 = vmatprep.subr.mxu0 0.0
        %1566 = vmatpush2.msra.mxu0 0.0
        %1567 = vmatprep.subr.mxu0 0.0
        %1568 = vmatpush2.msra.mxu0 0.0
        %1569 = vmatprep.subr.mxu0 0.0
        %1570 = vmatpush2.msra.mxu0 0.0
        %1571 = vmatprep.subr.mxu0 0.0
        %1572 = vmatpush2.msra.mxu0 0.0
        %1573 = vmatprep.subr.mxu0 0.0
        %1574 = vmatpush2.msra.mxu0 0.0
        %1575 = vmatprep.subr.mxu0 0.0
        %1576 = vmatpush2.msra.mxu0 0.0
        %1577 = vmatprep.subr.mxu0 0.0
        %1578 = vmatpush2.msra.mxu0 0.0
        %1579 = vmatprep.subr.mxu0 0.0
        %1580 = vmatpush2.msra.mxu0 0.0
        %1581 = vmatprep.subr.mxu0 0.0
        %1582 = vmatpush2.msra.mxu0 0.0
        %1583 = vmatprep.mubr.f32.mxu0 0.0
        %1584 = vmatmul.mubr.f32.gmra.mxu0 %v1517
        %v1585 = vpop.f32.mrf.mxu0
        %v1586 = vadd.f32 0.0, %v1585
        %v1587 = vpop.f32.mrf.mxu0
        %1588 = vdwg.mxu0
        %v1589 = vadd.f32 %v1293, %v1367
        %v1590 = vadd.f32 %v1294, %v1440
        %v1591 = vadd.f32 %v1295, %v1513
        %v1592 = vadd.f32 %v1296, %v1586
        %1593 = vst.msk [vmem:[#allocation5] sm:$0xff] %vm875, %v1589
        %1594 = vst.msk [vmem:[#allocation5 + $0x8] sm:$0xff] %vm875, %v1590
        %1595 = vst.msk [vmem:[#allocation5 + $0x10] sm:$0xff] %vm875, %v1591
        %1596 = vst.msk [vmem:[#allocation5 + $0x18] sm:$0xff] %vm875, %v1592
        %1597 = vst.msk [vmem:[#allocation3] sm:$0xff] %vm1264, %v1192
        %1598 = vst.msk [vmem:[#allocation3 + $0x8] sm:$0xff] %vm1264, %v1193
        %1599 = vst.msk [vmem:[#allocation3 + $0x10] sm:$0xff] %vm1264, %v1194
        %1600 = vst.msk [vmem:[#allocation3 + $0x18] sm:$0xff] %vm1264, %v1195
        // Predicated region
        $region97: #{tpu_custom_call.1} parent=63 // pred_check
          %p1601 = pneg %p561
        $region98: #{tpu_custom_call.1} parent=63 // pred_check_branch
          %1603 = sbr.rel (%p1601) target = $region100
        $region99: #{tpu_custom_call.1} parent=63 // pred_region
          %v1604 = vld [vmem:[#allocation4] sm:$0xff]
          %v1605 = vld [vmem:[#allocation4 + $0x8] sm:$0xff]
          %v1606 = vld [vmem:[#allocation4 + $0x10] sm:$0xff]
          %v1607 = vld [vmem:[#allocation4 + $0x18] sm:$0xff]
          %v1608 = vrcp.pop %v1604
          %v1609 = vrcp.pop %v1605
          %v1610 = vrcp.pop %v1606
          %v1611 = vrcp.pop %v1607
          %v1612 = vld [vmem:[#allocation5] sm:$0xff]
          %1614 = vset.pattern.permute.xlu0 0
          %1615 = vperm.xlu0 %1614, %v1608
          %v1616 = vpop.permute.xlu0 %1615
          %v1618 = vmul.f32 %v1612, %v1616
          %s1619 = scalar_lea.vmem [#allocation5], 8
          %v1620 = vld [vmem:[%s1619] sm:$0xff]
          %1622 = vset.pattern.permute.xlu0 0
          %1623 = vperm.xlu0 %1622, %v1609
          %v1624 = vpop.permute.xlu0 %1623
          %v1626 = vmul.f32 %v1620, %v1624
          %s1627 = scalar_lea.vmem [#allocation5], 16
          %v1628 = vld [vmem:[%s1627] sm:$0xff]
          %1630 = vset.pattern.permute.xlu0 0
          %1631 = vperm.xlu0 %1630, %v1610
          %v1632 = vpop.permute.xlu0 %1631
          %v1634 = vmul.f32 %v1628, %v1632
          %s1635 = scalar_lea.vmem [#allocation5], 24
          %v1636 = vld [vmem:[%s1635] sm:$0xff]
          %1638 = vset.pattern.permute.xlu0 0
          %1639 = vperm.xlu0 %1638, %v1611
          %v1640 = vpop.permute.xlu0 %1639
          %v1642 = vmul.f32 %v1636, %v1640
          %1644 = vrot.lane.b32.xlu0 %v1626, 8
          %v1645 = vpop.permute.xlu0 %1644
          %1648 = vrot.lane.b32.xlu0 %v1634, 16
          %v1649 = vpop.permute.xlu0 %1648
          %1652 = vrot.lane.b32.xlu0 %v1642, 24
          %v1653 = vpop.permute.xlu0 %1652
          %v1655 = vsel %vm875, %v1618, %v1645
          %vm1656 = vcmask 130048
          %v1657 = vsel %vm1656, %v1655, %v1649
          %vm1658 = vcmask 195584
          %v1659 = vsel %vm1658, %v1657, %v1653
          %v1660 = vld [vmem:[#allocation17] sm:$0xff]
          %v1661 = vld [vmem:[#allocation17 + $0x8] sm:$0xff]
          %v1662 = vld [vmem:[#allocation17 + $0x10] sm:$0xff]
          %v1663 = vld [vmem:[#allocation17 + $0x18] sm:$0xff]
          %v1664 = vld [vmem:[%s10] sm:$0x1]
          %v1666 = vlaneseq
          %v1667 = vshrl.u32 %v1666, 7
          %v1668 = vsub.s32 0, %v1667
          %v1669 = vrot.slane %v1664, %v1668
          %v1672 = vsel %vm696, %v1659, 0
          %1674 = vmatprep.subr.mxu0 0.0
          %1675 = vmatpush1.msra.mxu0 0.0
          %1676 = vmatprep.subr.mxu0 0.0
          %1677 = vmatpush1.msra.mxu0 0.0
          %1678 = vmatprep.subr.mxu0 0.0
          %1679 = vmatpush1.msra.mxu0 0.0
          %1680 = vmatprep.subr.mxu0 0.0
          %1681 = vmatpush1.msra.mxu0 0.0
          %1682 = vmatprep.subr.mxu0 0.0
          %1683 = vmatpush1.msra.mxu0 0.0
          %1684 = vmatprep.subr.mxu0 0.0
          %1685 = vmatpush1.msra.mxu0 0.0
          %1686 = vmatprep.subr.mxu0 0.0
          %1687 = vmatpush1.msra.mxu0 0.0
          %1688 = vmatprep.subr.mxu0 0.0
          %1689 = vmatpush1.msra.mxu0 0.0
          %1690 = vmatprep.subr.mxu0 0.0
          %1691 = vmatpush1.msra.mxu0 0.0
          %1692 = vmatprep.subr.mxu0 0.0
          %1693 = vmatpush1.msra.mxu0 0.0
          %1694 = vmatprep.subr.mxu0 0.0
          %1695 = vmatpush1.msra.mxu0 0.0
          %1696 = vmatprep.subr.mxu0 0.0
          %1697 = vmatpush1.msra.mxu0 0.0
          %1698 = vmatprep.subr.mxu0 0.0
          %1699 = vmatpush1.msra.mxu0 %v1663
          %1700 = vmatprep.subr.mxu0 0.0
          %1701 = vmatpush1.msra.mxu0 %v1662
          %1702 = vmatprep.subr.mxu0 0.0
          %1703 = vmatpush1.msra.mxu0 %v1661
          %1704 = vmatprep.subr.mxu0 0.0
          %1705 = vmatpush1.msra.mxu0 %v1660
          %1706 = vmatprep.subr.mxu0 0.0
          %1707 = vmatpush2.msra.mxu0 0.0
          %1708 = vmatprep.subr.mxu0 0.0
          %1709 = vmatpush2.msra.mxu0 0.0
          %1710 = vmatprep.subr.mxu0 0.0
          %1711 = vmatpush2.msra.mxu0 0.0
          %1712 = vmatprep.subr.mxu0 0.0
          %1713 = vmatpush2.msra.mxu0 0.0
          %1714 = vmatprep.subr.mxu0 0.0
          %1715 = vmatpush2.msra.mxu0 0.0
          %1716 = vmatprep.subr.mxu0 0.0
          %1717 = vmatpush2.msra.mxu0 0.0
          %1718 = vmatprep.subr.mxu0 0.0
          %1719 = vmatpush2.msra.mxu0 0.0
          %1720 = vmatprep.subr.mxu0 0.0
          %1721 = vmatpush2.msra.mxu0 0.0
          %1722 = vmatprep.subr.mxu0 0.0
          %1723 = vmatpush2.msra.mxu0 0.0
          %1724 = vmatprep.subr.mxu0 0.0
          %1725 = vmatpush2.msra.mxu0 0.0
          %1726 = vmatprep.subr.mxu0 0.0
          %1727 = vmatpush2.msra.mxu0 0.0
          %1728 = vmatprep.subr.mxu0 0.0
          %1729 = vmatpush2.msra.mxu0 0.0
          %1730 = vmatprep.subr.mxu0 0.0
          %1731 = vmatpush2.msra.mxu0 0.0
          %1732 = vmatprep.subr.mxu0 0.0
          %1733 = vmatpush2.msra.mxu0 0.0
          %1734 = vmatprep.subr.mxu0 0.0
          %1735 = vmatpush2.msra.mxu0 0.0
          %1736 = vmatprep.subr.mxu0 0.0
          %1737 = vmatpush2.msra.mxu0 0.0
          %1738 = vmatprep.mubr.f32.mxu0 0.0
          %1739 = vmatmul.mubr.f32.gmra.mxu0 %v1672
          %v1740 = vpop.f32.mrf.mxu0
          %v1741 = vadd.f32 %v1669, %v1740
          %v1742 = vpop.f32.mrf.mxu0
          %1743 = vdwg.mxu0
          %1744 = vst.msk [vmem:[%s560] sm:$0xff] %vm696, %v1741
        $region100: #{tpu_custom_call.1} parent=63 // pred_fallthru
          _
        %s1745 = sand.u32 %s314, 1
        %s1746 = scalar_lea.sflag [#allocation8], %s1745
        %s1747 = sand.u32 %s314, 1
        %s1748 = smul.addr %s1747, 8
        %s1749 = scalar_lea.vmem [#allocation18], %s1748
        // Predicated region
        $region101: #{tpu_custom_call.1} parent=63 // pred_check
          %p1750 = pneg %p324
        $region102: #{tpu_custom_call.1} parent=63 // pred_check_branch
          %1752 = sbr.rel (%p1750) target = $region104
        $region103: #{tpu_custom_call.1} parent=63 // pred_region
          %s1754 = ssub.s32 128, 128
          %1755 = vsyncadd %s1746, %s1754
          %s1756 = sadd.s32 %s39, %s38
          %s1757 = smul.addr %s1756, 128
          %s1758 = scalar_lea.hbm %s11, %s1757
          %s1760 = sshll.u32 %s1749, 4
          %s1761 = int_to_ptr.vmem [resolvable:$true] %s1760
          %1763 = dma.vmem_to_hbm [thread:$0]  %s1761, 128, %s1758, %s1746
        $region104: #{tpu_custom_call.1} parent=63 // pred_fallthru
          _
      $region64: #{tpu_custom_call.1} parent=5 // pred_fallthru
        _
      %p1764 = scmp.le.s32.totalorder 2, %s28
      // Predicated region
      $region105: #{tpu_custom_call.1} parent=5 // pred_check
        %p1765 = pneg %p1764
      $region106: #{tpu_custom_call.1} parent=5 // pred_check_branch
        %1767 = sbr.rel (%p1765) target = $region108
      $region107: #{tpu_custom_call.1} parent=5 // pred_region
        %s1768 = ssub.s32 %s28, 2
        // Predicated region
        $region109: #{tpu_custom_call.1} parent=107 // pred_check
          %p1769 = pneg %p330
        $region110: #{tpu_custom_call.1} parent=107 // pred_check_branch
          %1771 = sbr.rel (%p1769) target = $region112
        $region111: #{tpu_custom_call.1} parent=107 // pred_region
          %s1772 = sand.u32 %s315, 1
          %s1773 = scalar_lea.sflag [#allocation8], %s1772
          %s1774 = sand.u32 %s315, 1
          %s1775 = smul.addr %s1774, 8
          %s1776 = scalar_lea.vmem [#allocation18], %s1775
          %1777 = dma.done %s1773, 128
        $region112: #{tpu_custom_call.1} parent=107 // pred_fallthru
          _
      $region108: #{tpu_custom_call.1} parent=5 // pred_fallthru
        _
    $region6: #{tpu_custom_call.1} parent=1 // loop_footer
      %s32 = sadd.s32 1, %s28
    $region7: #{tpu_custom_call.1} parent=1 // loop_footer_branch
      %27 = sbr.rel target = $region3
    $region8: #{tpu_custom_call.1} parent=1 // loop_exit
      _
    %1778 = vsyncpa [#allocation7], 1
    %s1779 = scalar_lea.sflag [#allocation7], 1
    %1780 = vsyncpa %s1779, 1
    %1781 = vsyncpa [#allocation10], 1
    %s1782 = scalar_lea.sflag [#allocation10], 1
    %1783 = vsyncpa %s1782, 1
    %1784 = vsyncpa [#allocation13], 1
    %1785 = vsyncpa [#allocation16], 1
    %1786 = vsyncpa [#allocation8], 1
    %s1787 = scalar_lea.sflag [#allocation8], 1
    %1788 = vsyncpa %s1787, 1

</llo_original>
